<compile_context>
chip_gen: v7x
topology: tpu7x:2x2x1
jax: 0.10.0
libtpu: 0.0.40
codegen_flags: <defaults>
</compile_context>

<pallas_src>
import jax
import jax.numpy as jnp
from jax.experimental import pallas as pl
from jax.experimental.pallas import tpu as pltpu


IMG_DIM = 960          # fixed by the module (cnn first Linear has in_features=960)


def actor_kernel(compass_ref, image_ref,
                 w1_ref, b1_ref, w2_ref, b2_ref,
                 wc1_ref, bc1_ref, wc2_ref, bc2_ref, wc3_ref, bc3_ref,
                 wa_ref, ba_ref,
                 dist_ref):
    f32 = jnp.float32
    bf16 = jnp.bfloat16

    # --- compass MLP branch: Linear(state_dim,64) -> Tanh -> Linear(64,64) -> Tanh
    # bf16 operands on the MXU, f32 accumulation, f32 element-wise math.
    c = compass_ref[...].astype(bf16)
    h = jnp.tanh(jnp.dot(c, w1_ref[...], preferred_element_type=f32) + b1_ref[...])
    c_feat = jnp.tanh(jnp.dot(h.astype(bf16), w2_ref[...],
                              preferred_element_type=f32) + b2_ref[...])

    # --- image "cnn" branch (really an MLP): 960 -> 256 -> 128 -> 64, ReLU.
    # Raw f32 image is cast to bf16 only here, at the MXU input; logical K = 960.
    im = image_ref[...].astype(bf16)
    g = jnp.maximum(jnp.dot(im, wc1_ref[...], preferred_element_type=f32)
                    + bc1_ref[...], 0.0)
    g = jnp.maximum(jnp.dot(g.astype(bf16), wc2_ref[...], preferred_element_type=f32)
                    + bc2_ref[...], 0.0)
    i_feat = jnp.maximum(jnp.dot(g.astype(bf16), wc3_ref[...],
                                 preferred_element_type=f32) + bc3_ref[...], 0.0)

    # --- action head on concat([c_feat, i_feat], -1): single (TB,128)@(128,A)
    # matmul (concat is a lane-placement op, not a VMEM round trip).
    feat = jnp.concatenate([c_feat, i_feat], axis=-1).astype(bf16)
    logits = jnp.dot(feat, wa_ref[...], preferred_element_type=f32) + ba_ref[...]

    # --- Softmax(dim=-1), max-stabilized, f32, exact divide (dist is sampled from).
    m = jnp.max(logits, axis=-1, keepdims=True)
    e = jnp.exp(logits - m)
    denom = jnp.sum(e, axis=-1, keepdims=True)
    dist_ref[...] = e / denom
    # log(dist + 1e-6) is computed in the wrapper (single output = single writeback).


def _round_up(x, m):
    return (x + m - 1) // m * m


def actor_forward(compass, image, kparams, *, tb=1024):
    """Runs the ActorNet 'mixed' forward pass.  Returns (dist, log_probs).

    `compass` is (B, state_dim) float; `image` is (B, 960) float32 (a producer
    handing bf16 also works -- the kernel casts at the MXU input either way).
    No host-side pad/cast passes are performed on the image.
    """
    B, S = compass.shape
    A = kparams["ba"].shape[-1]
    IMG = kparams["wc1"].shape[0]
    assert image.shape == (B, IMG)

    # Tile selection:
    #  * at most tb rows per tile,
    #  * at least 2 tiles whenever B > 8 (v7x megacore has 2 TensorCores),
    #  * tile rounded up to 8 rows (f32 sublane); Pallas masks the ragged tail,
    #    so padded-batch waste is < 8 rows per tile and there is no host pad.
    n_tiles = max(pl.cdiv(B, tb), 2 if B > 8 else 1)
    TB = _round_up(pl.cdiv(B, n_tiles), 8)
    grid = (pl.cdiv(B, TB),)

    vmem = pltpu.MemorySpace.VMEM

    def batch_map(i):
        return (i, 0)

    def const_map(i):           # weights/biases stay resident across batch tiles
        return (0, 0)

    def w_spec(arr):
        return pl.BlockSpec(arr.shape, const_map, memory_space=vmem)

    in_specs = [
        pl.BlockSpec((TB, S), batch_map, memory_space=vmem),    # compass
        pl.BlockSpec((TB, IMG), batch_map, memory_space=vmem),  # image (raw f32)
        w_spec(kparams["w1"]), w_spec(kparams["b1"]),
        w_spec(kparams["w2"]), w_spec(kparams["b2"]),
        w_spec(kparams["wc1"]), w_spec(kparams["bc1"]),
        w_spec(kparams["wc2"]), w_spec(kparams["bc2"]),
        w_spec(kparams["wc3"]), w_spec(kparams["bc3"]),
        w_spec(kparams["wa"]), w_spec(kparams["ba"]),
    ]
    out_specs = pl.BlockSpec((TB, A), batch_map, memory_space=vmem)

    # Advisory cost estimate for XLA scheduling around the custom call.
    flops_per_row = 2 * (S * 64 + 64 * 64 + IMG * 256 + 256 * 128
                         + 128 * 64 + 128 * A)
    transc_per_row = 64 + 64 + A + 1        # tanh x2, exp, divide
    bytes_accessed = (
        int(compass.size) * compass.dtype.itemsize
        + int(image.size) * image.dtype.itemsize
        + sum(int(v.size) * v.dtype.itemsize for v in kparams.values())
        + B * A * 4)
    cost = pl.CostEstimate(flops=int(B * flops_per_row),
                           transcendentals=int(B * transc_per_row),
                           bytes_accessed=int(bytes_accessed))

    dist = pl.pallas_call(
        actor_kernel,
        out_shape=jax.ShapeDtypeStruct((B, A), jnp.float32),
        grid=grid,
        in_specs=in_specs,
        out_specs=out_specs,
        compiler_params=pltpu.CompilerParams(
            dimension_semantics=("parallel",),
            # TB=1024 footprint (~17 MiB) overshoots v5e's 16 MiB scoped default;
            # 40 MiB is comfortably under v7x's 64 MiB physical VMEM.
            vmem_limit_bytes=40 * 1024 * 1024),
        cost_estimate=cost,
    )(compass, image,
      kparams["w1"], kparams["b1"], kparams["w2"], kparams["b2"],
      kparams["wc1"], kparams["bc1"], kparams["wc2"], kparams["bc2"],
      kparams["wc3"], kparams["bc3"],
      kparams["wa"], kparams["ba"])

    log_probs = jnp.log(dist + 1e-6)        # reparam_noise; fused cheaply by XLA
    return dist, log_probs


def _linear_params(key, fan_in, fan_out):
    # PyTorch nn.Linear default init: U(-1/sqrt(fan_in), 1/sqrt(fan_in))
    kw, kb = jax.random.split(key)
    bound = 1.0 / jnp.sqrt(float(fan_in))
    w = jax.random.uniform(kw, (fan_in, fan_out), jnp.float32, -bound, bound)
    b = jax.random.uniform(kb, (1, fan_out), jnp.float32, -bound, bound)
    return w, b


def init_params(key, state_dim, action_dim):
    keys = jax.random.split(key, 6)
    p = {}
    p["w1"], p["b1"] = _linear_params(keys[0], state_dim, 64)        # mlp[0]
    p["w2"], p["b2"] = _linear_params(keys[1], 64, 64)               # mlp[2]
    p["wc1"], p["bc1"] = _linear_params(keys[2], IMG_DIM, 256)       # cnn[0]
    p["wc2"], p["bc2"] = _linear_params(keys[3], 256, 128)           # cnn[2]
    p["wc3"], p["bc3"] = _linear_params(keys[4], 128, 64)            # cnn[4]
    p["wa"], p["ba"] = _linear_params(keys[5], 64 + 64, action_dim)  # action[0]
    return p


def prepare_kernel_params(p):
    """Host-side one-time repack: bf16 weights (already (in,out) layout),
    f32 (1,out) bias rows.  No padding, no action-head split."""
    bf16 = jnp.bfloat16
    kp = {}
    kp["w1"] = p["w1"].astype(bf16);   kp["b1"] = p["b1"]
    kp["w2"] = p["w2"].astype(bf16);   kp["b2"] = p["b2"]
    kp["wc1"] = p["wc1"].astype(bf16); kp["bc1"] = p["bc1"]
    kp["wc2"] = p["wc2"].astype(bf16); kp["bc2"] = p["bc2"]
    kp["wc3"] = p["wc3"].astype(bf16); kp["bc3"] = p["bc3"]
    kp["wa"] = p["wa"].astype(bf16);   kp["ba"] = p["ba"]
    return kp


def reference_forward(compass, image, p):
    # plain-JAX f32 reference of ActorNet.forward(mode='mixed')
    h = jnp.tanh(compass @ p["w1"] + p["b1"])
    c_feat = jnp.tanh(h @ p["w2"] + p["b2"])
    g = jax.nn.relu(image @ p["wc1"] + p["bc1"])
    g = jax.nn.relu(g @ p["wc2"] + p["bc2"])
    i_feat = jax.nn.relu(g @ p["wc3"] + p["bc3"])
    feat = jnp.concatenate([c_feat, i_feat], axis=-1)
    dist = jax.nn.softmax(feat @ p["wa"] + p["ba"], axis=-1)
    return dist, jnp.log(dist + 1e-6)


if __name__ == "__main__":
    key = jax.random.PRNGKey(0)
    k_param, k_compass, k_image = jax.random.split(key, 3)

    batch = 2
    state_dim = 8        # 'compass' observation dim
    action_dim = 4

    params = init_params(k_param, state_dim, action_dim)
    kparams = prepare_kernel_params(params)
    compass = jax.random.normal(k_compass, (batch, state_dim), jnp.float32)
    image = jax.random.normal(k_image, (batch, IMG_DIM), jnp.float32)

    dist, logp = actor_forward(compass, image, kparams)
    jax.block_until_ready((dist, logp))

    ref_dist, ref_logp = reference_forward(compass, image, params)
    # bf16 weights / MXU path vs f32 reference -> loosened tolerances.
    assert jnp.allclose(dist, ref_dist, atol=2e-2, rtol=2e-2)
    assert jnp.allclose(logp, ref_logp, atol=5e-2, rtol=5e-2)
    # internal-consistency checks stay tight (exact divide in the softmax now)
    assert jnp.allclose(jnp.sum(dist, axis=-1), 1.0, atol=1e-5)
    assert jnp.allclose(logp, jnp.log(dist + 1e-6), atol=1e-6)
    assert dist.shape == (batch, action_dim) and logp.shape == (batch, action_dim)

    print("KERNEL_OK")
</pallas_src>

<mosaic_0001>
module attributes {stable_mosaic.version = 11 : i64} {
  func.func @actor_kernel(%arg0: i32, %arg1: memref<8x8xf32, #tpu.memory_space<vmem>>, %arg2: memref<8x960xf32, #tpu.memory_space<vmem>>, %arg3: memref<8x64xbf16, #tpu.memory_space<vmem>>, %arg4: memref<1x64xf32, #tpu.memory_space<vmem>>, %arg5: memref<64x64xbf16, #tpu.memory_space<vmem>>, %arg6: memref<1x64xf32, #tpu.memory_space<vmem>>, %arg7: memref<960x256xbf16, #tpu.memory_space<vmem>>, %arg8: memref<1x256xf32, #tpu.memory_space<vmem>>, %arg9: memref<256x128xbf16, #tpu.memory_space<vmem>>, %arg10: memref<1x128xf32, #tpu.memory_space<vmem>>, %arg11: memref<128x64xbf16, #tpu.memory_space<vmem>>, %arg12: memref<1x64xf32, #tpu.memory_space<vmem>>, %arg13: memref<128x4xbf16, #tpu.memory_space<vmem>>, %arg14: memref<1x4xf32, #tpu.memory_space<vmem>>, %arg15: memref<8x4xf32, #tpu.memory_space<vmem>>) attributes {dimension_semantics = [#tpu.dimension_semantics<parallel>], iteration_bounds = array<i64: 1>, scalar_prefetch = 0 : i64, scratch_operands = 0 : i64, tpu.core_type = #tpu.core_type<tc>, window_params = [{transform_indices = @transform_0, window_bounds = array<i64: 8, 8>}, {transform_indices = @transform_1, window_bounds = array<i64: 8, 960>}, {pipeline_mode = #tpu.pipeline_mode<synchronous>, transform_indices = @transform_2, window_bounds = array<i64: 8, 64>}, {pipeline_mode = #tpu.pipeline_mode<synchronous>, transform_indices = @transform_3, window_bounds = array<i64: 1, 64>}, {pipeline_mode = #tpu.pipeline_mode<synchronous>, transform_indices = @transform_4, window_bounds = array<i64: 64, 64>}, {pipeline_mode = #tpu.pipeline_mode<synchronous>, transform_indices = @transform_5, window_bounds = array<i64: 1, 64>}, {pipeline_mode = #tpu.pipeline_mode<synchronous>, transform_indices = @transform_6, window_bounds = array<i64: 960, 256>}, {pipeline_mode = #tpu.pipeline_mode<synchronous>, transform_indices = @transform_7, window_bounds = array<i64: 1, 256>}, {pipeline_mode = #tpu.pipeline_mode<synchronous>, transform_indices = @transform_8, window_bounds = array<i64: 256, 128>}, {pipeline_mode = #tpu.pipeline_mode<synchronous>, transform_indices = @transform_9, window_bounds = array<i64: 1, 128>}, {pipeline_mode = #tpu.pipeline_mode<synchronous>, transform_indices = @transform_10, window_bounds = array<i64: 128, 64>}, {pipeline_mode = #tpu.pipeline_mode<synchronous>, transform_indices = @transform_11, window_bounds = array<i64: 1, 64>}, {pipeline_mode = #tpu.pipeline_mode<synchronous>, transform_indices = @transform_12, window_bounds = array<i64: 128, 4>}, {pipeline_mode = #tpu.pipeline_mode<synchronous>, transform_indices = @transform_13, window_bounds = array<i64: 1, 4>}, {transform_indices = @transform_14, window_bounds = array<i64: 8, 4>}]} {
    %c0 = arith.constant 0 : index
    %c0_0 = arith.constant 0 : index
    %0 = vector.load %arg1[%c0, %c0_0] : memref<8x8xf32, #tpu.memory_space<vmem>>, vector<8x8xf32>
    %1 = arith.truncf %0 : vector<8x8xf32> to vector<8x8xbf16>
    %c0_1 = arith.constant 0 : index
    %c0_2 = arith.constant 0 : index
    %2 = vector.load %arg3[%c0_1, %c0_2] : memref<8x64xbf16, #tpu.memory_space<vmem>>, vector<8x64xbf16>
    %cst = arith.constant dense<0.000000e+00> : vector<8x64xf32>
    %3 = tpu.matmul %1, %2, %cst {dimension_numbers = #tpu.dot_dimension_numbers<[1], [0], [0], [1], [0, 0, 1, 1], [], []>} : vector<8x8xbf16>, vector<8x64xbf16>, vector<8x64xf32> -> vector<8x64xf32>
    %c0_3 = arith.constant 0 : index
    %c0_4 = arith.constant 0 : index
    %4 = vector.load %arg4[%c0_3, %c0_4] : memref<1x64xf32, #tpu.memory_space<vmem>>, vector<1x64xf32>
    %5 = vector.broadcast %4 : vector<1x64xf32> to vector<8x64xf32>
    %6 = arith.addf %3, %5 : vector<8x64xf32>
    %7 = math.tanh %6 : vector<8x64xf32>
    %8 = arith.truncf %7 : vector<8x64xf32> to vector<8x64xbf16>
    %c0_5 = arith.constant 0 : index
    %c0_6 = arith.constant 0 : index
    %9 = vector.load %arg5[%c0_5, %c0_6] : memref<64x64xbf16, #tpu.memory_space<vmem>>, vector<64x64xbf16>
    %cst_7 = arith.constant dense<0.000000e+00> : vector<8x64xf32>
    %10 = tpu.matmul %8, %9, %cst_7 {dimension_numbers = #tpu.dot_dimension_numbers<[1], [0], [0], [1], [0, 0, 1, 1], [], []>} : vector<8x64xbf16>, vector<64x64xbf16>, vector<8x64xf32> -> vector<8x64xf32>
    %c0_8 = arith.constant 0 : index
    %c0_9 = arith.constant 0 : index
    %11 = vector.load %arg6[%c0_8, %c0_9] : memref<1x64xf32, #tpu.memory_space<vmem>>, vector<1x64xf32>
    %12 = vector.broadcast %11 : vector<1x64xf32> to vector<8x64xf32>
    %13 = arith.addf %10, %12 : vector<8x64xf32>
    %14 = math.tanh %13 : vector<8x64xf32>
    %c0_10 = arith.constant 0 : index
    %c0_11 = arith.constant 0 : index
    %15 = vector.load %arg2[%c0_10, %c0_11] : memref<8x960xf32, #tpu.memory_space<vmem>>, vector<8x960xf32>
    %16 = arith.truncf %15 : vector<8x960xf32> to vector<8x960xbf16>
    %c0_12 = arith.constant 0 : index
    %c0_13 = arith.constant 0 : index
    %17 = vector.load %arg7[%c0_12, %c0_13] : memref<960x256xbf16, #tpu.memory_space<vmem>>, vector<960x256xbf16>
    %cst_14 = arith.constant dense<0.000000e+00> : vector<8x256xf32>
    %18 = tpu.matmul %16, %17, %cst_14 {dimension_numbers = #tpu.dot_dimension_numbers<[1], [0], [0], [1], [0, 0, 1, 1], [], []>} : vector<8x960xbf16>, vector<960x256xbf16>, vector<8x256xf32> -> vector<8x256xf32>
    %c0_15 = arith.constant 0 : index
    %c0_16 = arith.constant 0 : index
    %19 = vector.load %arg8[%c0_15, %c0_16] : memref<1x256xf32, #tpu.memory_space<vmem>>, vector<1x256xf32>
    %20 = vector.broadcast %19 : vector<1x256xf32> to vector<8x256xf32>
    %21 = arith.addf %18, %20 : vector<8x256xf32>
    %cst_17 = arith.constant 0.000000e+00 : f32
    %22 = vector.broadcast %cst_17 : f32 to vector<8x256xf32>
    %23 = arith.maximumf %21, %22 : vector<8x256xf32>
    %24 = arith.truncf %23 : vector<8x256xf32> to vector<8x256xbf16>
    %c0_18 = arith.constant 0 : index
    %c0_19 = arith.constant 0 : index
    %25 = vector.load %arg9[%c0_18, %c0_19] : memref<256x128xbf16, #tpu.memory_space<vmem>>, vector<256x128xbf16>
    %cst_20 = arith.constant dense<0.000000e+00> : vector<8x128xf32>
    %26 = tpu.matmul %24, %25, %cst_20 {dimension_numbers = #tpu.dot_dimension_numbers<[1], [0], [0], [1], [0, 0, 1, 1], [], []>} : vector<8x256xbf16>, vector<256x128xbf16>, vector<8x128xf32> -> vector<8x128xf32>
    %c0_21 = arith.constant 0 : index
    %c0_22 = arith.constant 0 : index
    %27 = vector.load %arg10[%c0_21, %c0_22] : memref<1x128xf32, #tpu.memory_space<vmem>>, vector<1x128xf32>
    %28 = vector.broadcast %27 : vector<1x128xf32> to vector<8x128xf32>
    %29 = arith.addf %26, %28 : vector<8x128xf32>
    %cst_23 = arith.constant 0.000000e+00 : f32
    %30 = vector.broadcast %cst_23 : f32 to vector<8x128xf32>
    %31 = arith.maximumf %29, %30 : vector<8x128xf32>
    %32 = arith.truncf %31 : vector<8x128xf32> to vector<8x128xbf16>
    %c0_24 = arith.constant 0 : index
    %c0_25 = arith.constant 0 : index
    %33 = vector.load %arg11[%c0_24, %c0_25] : memref<128x64xbf16, #tpu.memory_space<vmem>>, vector<128x64xbf16>
    %cst_26 = arith.constant dense<0.000000e+00> : vector<8x64xf32>
    %34 = tpu.matmul %32, %33, %cst_26 {dimension_numbers = #tpu.dot_dimension_numbers<[1], [0], [0], [1], [0, 0, 1, 1], [], []>} : vector<8x128xbf16>, vector<128x64xbf16>, vector<8x64xf32> -> vector<8x64xf32>
    %c0_27 = arith.constant 0 : index
    %c0_28 = arith.constant 0 : index
    %35 = vector.load %arg12[%c0_27, %c0_28] : memref<1x64xf32, #tpu.memory_space<vmem>>, vector<1x64xf32>
    %36 = vector.broadcast %35 : vector<1x64xf32> to vector<8x64xf32>
    %37 = arith.addf %34, %36 : vector<8x64xf32>
    %cst_29 = arith.constant 0.000000e+00 : f32
    %38 = vector.broadcast %cst_29 : f32 to vector<8x64xf32>
    %39 = arith.maximumf %37, %38 : vector<8x64xf32>
    %40 = tpu.concatenate %14, %39 in 1 : vector<8x64xf32>, vector<8x64xf32> -> vector<8x128xf32>
    %41 = arith.truncf %40 : vector<8x128xf32> to vector<8x128xbf16>
    %c0_30 = arith.constant 0 : index
    %c0_31 = arith.constant 0 : index
    %42 = vector.load %arg13[%c0_30, %c0_31] : memref<128x4xbf16, #tpu.memory_space<vmem>>, vector<128x4xbf16>
    %cst_32 = arith.constant dense<0.000000e+00> : vector<8x4xf32>
    %43 = tpu.matmul %41, %42, %cst_32 {dimension_numbers = #tpu.dot_dimension_numbers<[1], [0], [0], [1], [0, 0, 1, 1], [], []>} : vector<8x128xbf16>, vector<128x4xbf16>, vector<8x4xf32> -> vector<8x4xf32>
    %c0_33 = arith.constant 0 : index
    %c0_34 = arith.constant 0 : index
    %44 = vector.load %arg14[%c0_33, %c0_34] : memref<1x4xf32, #tpu.memory_space<vmem>>, vector<1x4xf32>
    %45 = vector.broadcast %44 : vector<1x4xf32> to vector<8x4xf32>
    %46 = arith.addf %43, %45 : vector<8x4xf32>
    %cst_35 = arith.constant dense<0xFF800000> : vector<8xf32>
    %47 = vector.multi_reduction <maximumf>, %46, %cst_35 [1] : vector<8x4xf32> to vector<8xf32>
    %48 = vector.shape_cast %47 : vector<8xf32> to vector<8x1xf32>
    %49 = vector.broadcast %48 : vector<8x1xf32> to vector<8x4xf32>
    %50 = arith.subf %46, %49 : vector<8x4xf32>
    %51 = math.exp %50 : vector<8x4xf32>
    %cst_36 = arith.constant dense<0.000000e+00> : vector<8xf32>
    %52 = vector.multi_reduction <add>, %51, %cst_36 [1] : vector<8x4xf32> to vector<8xf32>
    %53 = vector.shape_cast %52 : vector<8xf32> to vector<8x1xf32>
    %54 = vector.broadcast %53 : vector<8x1xf32> to vector<8x4xf32>
    %55 = arith.divf %51, %54 : vector<8x4xf32>
    %c0_37 = arith.constant 0 : index
    %c0_38 = arith.constant 0 : index
    %56 = vector.load %arg15[%c0_37, %c0_38] : memref<8x4xf32, #tpu.memory_space<vmem>>, vector<8x4xf32>
    tpu.vector_store %arg15[%c0_37, %c0_38], %55 {strides = array<i32>} : memref<8x4xf32, #tpu.memory_space<vmem>>, vector<8x4xf32>,
    return
  }
  func.func @transform_0(%arg0: i32) -> (i32, i32) {
    %c0_i32 = arith.constant 0 : i32
    %c0_i32_0 = arith.constant 0 : i32
    return %arg0, %c0_i32 : i32, i32
  }
  func.func @transform_1(%arg0: i32) -> (i32, i32) {
    %c0_i32 = arith.constant 0 : i32
    %c0_i32_0 = arith.constant 0 : i32
    return %arg0, %c0_i32 : i32, i32
  }
  func.func @transform_2(%arg0: i32) -> (i32, i32) {
    %c0_i32 = arith.constant 0 : i32
    %c0_i32_0 = arith.constant 0 : i32
    %c0_i32_1 = arith.constant 0 : i32
    return %c0_i32, %c0_i32_0 : i32, i32
  }
  func.func @transform_3(%arg0: i32) -> (i32, i32) {
    %c0_i32 = arith.constant 0 : i32
    %c0_i32_0 = arith.constant 0 : i32
    %c0_i32_1 = arith.constant 0 : i32
    return %c0_i32, %c0_i32_0 : i32, i32
  }
  func.func @transform_4(%arg0: i32) -> (i32, i32) {
    %c0_i32 = arith.constant 0 : i32
    %c0_i32_0 = arith.constant 0 : i32
    %c0_i32_1 = arith.constant 0 : i32
    return %c0_i32, %c0_i32_0 : i32, i32
  }
  func.func @transform_5(%arg0: i32) -> (i32, i32) {
    %c0_i32 = arith.constant 0 : i32
    %c0_i32_0 = arith.constant 0 : i32
    %c0_i32_1 = arith.constant 0 : i32
    return %c0_i32, %c0_i32_0 : i32, i32
  }
  func.func @transform_6(%arg0: i32) -> (i32, i32) {
    %c0_i32 = arith.constant 0 : i32
    %c0_i32_0 = arith.constant 0 : i32
    %c0_i32_1 = arith.constant 0 : i32
    return %c0_i32, %c0_i32_0 : i32, i32
  }
  func.func @transform_7(%arg0: i32) -> (i32, i32) {
    %c0_i32 = arith.constant 0 : i32
    %c0_i32_0 = arith.constant 0 : i32
    %c0_i32_1 = arith.constant 0 : i32
    return %c0_i32, %c0_i32_0 : i32, i32
  }
  func.func @transform_8(%arg0: i32) -> (i32, i32) {
    %c0_i32 = arith.constant 0 : i32
    %c0_i32_0 = arith.constant 0 : i32
    %c0_i32_1 = arith.constant 0 : i32
    return %c0_i32, %c0_i32_0 : i32, i32
  }
  func.func @transform_9(%arg0: i32) -> (i32, i32) {
    %c0_i32 = arith.constant 0 : i32
    %c0_i32_0 = arith.constant 0 : i32
    %c0_i32_1 = arith.constant 0 : i32
    return %c0_i32, %c0_i32_0 : i32, i32
  }
  func.func @transform_10(%arg0: i32) -> (i32, i32) {
    %c0_i32 = arith.constant 0 : i32
    %c0_i32_0 = arith.constant 0 : i32
    %c0_i32_1 = arith.constant 0 : i32
    return %c0_i32, %c0_i32_0 : i32, i32
  }
  func.func @transform_11(%arg0: i32) -> (i32, i32) {
    %c0_i32 = arith.constant 0 : i32
    %c0_i32_0 = arith.constant 0 : i32
    %c0_i32_1 = arith.constant 0 : i32
    return %c0_i32, %c0_i32_0 : i32, i32
  }
  func.func @transform_12(%arg0: i32) -> (i32, i32) {
    %c0_i32 = arith.constant 0 : i32
    %c0_i32_0 = arith.constant 0 : i32
    %c0_i32_1 = arith.constant 0 : i32
    return %c0_i32, %c0_i32_0 : i32, i32
  }
  func.func @transform_13(%arg0: i32) -> (i32, i32) {
    %c0_i32 = arith.constant 0 : i32
    %c0_i32_0 = arith.constant 0 : i32
    %c0_i32_1 = arith.constant 0 : i32
    return %c0_i32, %c0_i32_0 : i32, i32
  }
  func.func @transform_14(%arg0: i32) -> (i32, i32) {
    %c0_i32 = arith.constant 0 : i32
    %c0_i32_0 = arith.constant 0 : i32
    return %arg0, %c0_i32 : i32, i32
  }
}

</mosaic_0001>

<llo_original>
// kernel: tpu_custom_call.1
$region0: #{tpu_custom_call.1}
  #allocation0 [shape = 'u32[]', space=smem, size = 0x4, offset = 0x4, fixed_abs, tag = 'smem constant byte address 0x4 - core index']
  #allocation1 [shape = 'u32[144,128]{1,0:T(1,128)}', space=vmem, size = 0x12000, scoped, tag = 'internal scratch']
  %s0 = inlined_call_operand.vmem [shape: f32[2,8], index: 0, kind: input, shape index: {}]
  %s1 = inlined_call_operand.hbm [shape: f32[2,960], index: 1, kind: input, shape index: {}]
  %s2 = inlined_call_operand.vmem [shape: bf16[8,64], index: 2, kind: input, shape index: {}]
  %s3 = inlined_call_operand.vmem [shape: f32[1,64], index: 3, kind: input, shape index: {}]
  %s4 = inlined_call_operand.vmem [shape: bf16[64,64], index: 4, kind: input, shape index: {}]
  %s5 = inlined_call_operand.hbm [shape: f32[1,64], index: 5, kind: input, shape index: {}]
  %s6 = inlined_call_operand.hbm [shape: bf16[960,256], index: 6, kind: input, shape index: {}]
  %s7 = inlined_call_operand.hbm [shape: f32[1,256], index: 7, kind: input, shape index: {}]
  %s8 = inlined_call_operand.vmem [shape: bf16[256,128], index: 8, kind: input, shape index: {}]
  %s9 = inlined_call_operand.hbm [shape: f32[1,128], index: 9, kind: input, shape index: {}]
  %s10 = inlined_call_operand.vmem [shape: bf16[128,64], index: 10, kind: input, shape index: {}]
  %s11 = inlined_call_operand.vmem [shape: f32[1,64], index: 11, kind: input, shape index: {}]
  %s12 = inlined_call_operand.vmem [shape: bf16[128,4], index: 12, kind: input, shape index: {}]
  %s13 = inlined_call_operand.vmem [shape: f32[1,4], index: 13, kind: input, shape index: {}]
  %s14 = inlined_call_operand.hbm [shape: f32[2,4], index: 14, kind: output, shape index: {}]
  %s15 = sld [smem:[#allocation0]]
  $region86: #{tpu_custom_call.1} parent=0
    _
  %s17 = ssub.s32 1, %s15
  %s18 = scalar_select 0, %s17, %s15
  $region1: #{tpu_custom_call.1} parent=0
    #allocation2 [shape = 'u8[32768]{0}', space=vmem, size = 0x8000, scoped, tag = 'input window, operand 1, single buffered']
    #allocation3 [shape = 's32[1]{0}', space=sflag, size = 0x4, scoped, tag = 'scoped memory for tpu_custom_call.1']
    #allocation4 [shape = 's32[1]{0}', space=sflag, size = 0x4, scoped, tag = 'scoped memory for tpu_custom_call.1']
    #allocation5 [shape = 'u8[512]{0}', space=vmem, size = 0x400, scoped, tag = 'input window, operand 5, single buffered']
    #allocation6 [shape = 's32[1]{0}', space=sflag, size = 0x4, scoped, tag = 'scoped memory for tpu_custom_call.1']
    #allocation7 [shape = 'u8[491520]{0}', space=vmem, size = 0x78000, scoped, tag = 'input window, operand 6, single buffered']
    #allocation8 [shape = 'u8[1024]{0}', space=vmem, size = 0x400, scoped, tag = 'input window, operand 7, single buffered']
    #allocation9 [shape = 's32[1]{0}', space=sflag, size = 0x4, scoped, tag = 'scoped memory for tpu_custom_call.1']
    #allocation10 [shape = 'u8[512]{0}', space=vmem, size = 0x400, scoped, tag = 'input window, operand 9, single buffered']
    #allocation11 [shape = 'u8[4096]{0}', space=vmem, size = 0x1000, scoped, tag = 'output window, operand 0, single buffered']
    %19 = vsyncpa [#allocation3], 0
    %20 = vsyncpa [#allocation6], 0
    %21 = vsyncpa [#allocation9], 0
    %22 = vsyncpa [#allocation4], 0
    // Predicated region
    $region2: #{tpu_custom_call.1} parent=1 // pred_check
      _
    $region3: #{tpu_custom_call.1} parent=1 // pred_check_branch
      %24 = sbr.rel (0) target = $region5
    $region4: #{tpu_custom_call.1} parent=1 // pred_region
      _
    $region5: #{tpu_custom_call.1} parent=1 // pred_fallthru
      _
    // Predicated region
    $region6: #{tpu_custom_call.1} parent=1 // pred_check
      _
    $region7: #{tpu_custom_call.1} parent=1 // pred_check_branch
      %26 = sbr.rel (0) target = $region9
    $region8: #{tpu_custom_call.1} parent=1 // pred_region
      %s28 = ssub.s32 1024, 256
      %29 = vsyncadd [#allocation3], %s28
      %s30 = sshll.u32 [#allocation2], 4
      %s31 = int_to_ptr.vmem [resolvable:$true] %s30
      %36 = dma.hbm_to_vmem [thread:$0]  %s1, 256, %s31, [#allocation3], 256, 256, 16
    $region9: #{tpu_custom_call.1} parent=1 // pred_fallthru
      _
    // Predicated region
    $region10: #{tpu_custom_call.1} parent=1 // pred_check
      _
    $region11: #{tpu_custom_call.1} parent=1 // pred_check_branch
      %38 = sbr.rel (0) target = $region13
    $region12: #{tpu_custom_call.1} parent=1 // pred_region
      _
    $region13: #{tpu_custom_call.1} parent=1 // pred_fallthru
      _
    // Predicated region
    $region14: #{tpu_custom_call.1} parent=1 // pred_check
      _
    $region15: #{tpu_custom_call.1} parent=1 // pred_check_branch
      %40 = sbr.rel (0) target = $region17
    $region16: #{tpu_custom_call.1} parent=1 // pred_region
      _
    $region17: #{tpu_custom_call.1} parent=1 // pred_fallthru
      _
    // Predicated region
    $region18: #{tpu_custom_call.1} parent=1 // pred_check
      _
    $region19: #{tpu_custom_call.1} parent=1 // pred_check_branch
      %42 = sbr.rel (0) target = $region21
    $region20: #{tpu_custom_call.1} parent=1 // pred_region
      _
    $region21: #{tpu_custom_call.1} parent=1 // pred_fallthru
      _
    // Predicated region
    $region22: #{tpu_custom_call.1} parent=1 // pred_check
      _
    $region23: #{tpu_custom_call.1} parent=1 // pred_check_branch
      %44 = sbr.rel (0) target = $region25
    $region24: #{tpu_custom_call.1} parent=1 // pred_region
      %s46 = ssub.s32 16, 16
      %47 = vsyncadd [#allocation6], %s46
      %s49 = sshll.u32 [#allocation5], 4
      %s50 = int_to_ptr.vmem [resolvable:$true] %s49
      %52 = dma.hbm_to_vmem [thread:$0]  %s5, 16, %s50, [#allocation6]
    $region25: #{tpu_custom_call.1} parent=1 // pred_fallthru
      _
    // Predicated region
    $region26: #{tpu_custom_call.1} parent=1 // pred_check
      _
    $region27: #{tpu_custom_call.1} parent=1 // pred_check_branch
      %54 = sbr.rel (0) target = $region29
    $region28: #{tpu_custom_call.1} parent=1 // pred_region
      %s56 = ssub.s32 15360, 15360
      %57 = vsyncadd [#allocation6], %s56
      %s58 = sshll.u32 [#allocation7], 4
      %s59 = int_to_ptr.vmem [resolvable:$true] %s58
      %64 = dma.hbm_to_vmem [thread:$0]  %s6, 15360, %s59, [#allocation6], 128, 128, 8
    $region29: #{tpu_custom_call.1} parent=1 // pred_fallthru
      _
    // Predicated region
    $region30: #{tpu_custom_call.1} parent=1 // pred_check
      _
    $region31: #{tpu_custom_call.1} parent=1 // pred_check_branch
      %66 = sbr.rel (0) target = $region33
    $region32: #{tpu_custom_call.1} parent=1 // pred_region
      %s68 = ssub.s32 32, 32
      %69 = vsyncadd [#allocation9], %s68
      %s71 = sshll.u32 [#allocation8], 4
      %s72 = int_to_ptr.vmem [resolvable:$true] %s71
      %74 = dma.hbm_to_vmem [thread:$0]  %s7, 32, %s72, [#allocation9]
    $region33: #{tpu_custom_call.1} parent=1 // pred_fallthru
      _
    // Predicated region
    $region34: #{tpu_custom_call.1} parent=1 // pred_check
      _
    $region35: #{tpu_custom_call.1} parent=1 // pred_check_branch
      %76 = sbr.rel (0) target = $region37
    $region36: #{tpu_custom_call.1} parent=1 // pred_region
      _
    $region37: #{tpu_custom_call.1} parent=1 // pred_fallthru
      _
    // Predicated region
    $region38: #{tpu_custom_call.1} parent=1 // pred_check
      _
    $region39: #{tpu_custom_call.1} parent=1 // pred_check_branch
      %78 = sbr.rel (0) target = $region41
    $region40: #{tpu_custom_call.1} parent=1 // pred_region
      %s80 = ssub.s32 16, 16
      %81 = vsyncadd [#allocation9], %s80
      %s83 = sshll.u32 [#allocation10], 4
      %s84 = int_to_ptr.vmem [resolvable:$true] %s83
      %86 = dma.hbm_to_vmem [thread:$0]  %s9, 16, %s84, [#allocation9]
    $region41: #{tpu_custom_call.1} parent=1 // pred_fallthru
      _
    // Predicated region
    $region42: #{tpu_custom_call.1} parent=1 // pred_check
      _
    $region43: #{tpu_custom_call.1} parent=1 // pred_check_branch
      %88 = sbr.rel (0) target = $region45
    $region44: #{tpu_custom_call.1} parent=1 // pred_region
      _
    $region45: #{tpu_custom_call.1} parent=1 // pred_fallthru
      _
    // Predicated region
    $region46: #{tpu_custom_call.1} parent=1 // pred_check
      _
    $region47: #{tpu_custom_call.1} parent=1 // pred_check_branch
      %90 = sbr.rel (0) target = $region49
    $region48: #{tpu_custom_call.1} parent=1 // pred_region
      _
    $region49: #{tpu_custom_call.1} parent=1 // pred_fallthru
      _
    // Predicated region
    $region50: #{tpu_custom_call.1} parent=1 // pred_check
      _
    $region51: #{tpu_custom_call.1} parent=1 // pred_check_branch
      %92 = sbr.rel (0) target = $region53
    $region52: #{tpu_custom_call.1} parent=1 // pred_region
      _
    $region53: #{tpu_custom_call.1} parent=1 // pred_fallthru
      _
    // Predicated region
    $region54: #{tpu_custom_call.1} parent=1 // pred_check
      _
    $region55: #{tpu_custom_call.1} parent=1 // pred_check_branch
      %94 = sbr.rel (0) target = $region57
    $region56: #{tpu_custom_call.1} parent=1 // pred_region
      _
    $region57: #{tpu_custom_call.1} parent=1 // pred_fallthru
      _
    // Predicated region
    $region58: #{tpu_custom_call.1} parent=1 // pred_check
      _
    $region59: #{tpu_custom_call.1} parent=1 // pred_check_branch
      %96 = sbr.rel (0) target = $region61
    $region60: #{tpu_custom_call.1} parent=1 // pred_region
      %97 = dma.done [#allocation3], 1024
    $region61: #{tpu_custom_call.1} parent=1 // pred_fallthru
      _
    // Predicated region
    $region62: #{tpu_custom_call.1} parent=1 // pred_check
      _
    $region63: #{tpu_custom_call.1} parent=1 // pred_check_branch
      %99 = sbr.rel (0) target = $region65
    $region64: #{tpu_custom_call.1} parent=1 // pred_region
      %100 = dma.done [#allocation6], 16
    $region65: #{tpu_custom_call.1} parent=1 // pred_fallthru
      _
    // Predicated region
    $region66: #{tpu_custom_call.1} parent=1 // pred_check
      _
    $region67: #{tpu_custom_call.1} parent=1 // pred_check_branch
      %102 = sbr.rel (0) target = $region69
    $region68: #{tpu_custom_call.1} parent=1 // pred_region
      %103 = dma.done [#allocation6], 15360
    $region69: #{tpu_custom_call.1} parent=1 // pred_fallthru
      _
    // Predicated region
    $region70: #{tpu_custom_call.1} parent=1 // pred_check
      _
    $region71: #{tpu_custom_call.1} parent=1 // pred_check_branch
      %105 = sbr.rel (0) target = $region73
    $region72: #{tpu_custom_call.1} parent=1 // pred_region
      %106 = dma.done [#allocation9], 32
    $region73: #{tpu_custom_call.1} parent=1 // pred_fallthru
      _
    // Predicated region
    $region74: #{tpu_custom_call.1} parent=1 // pred_check
      _
    $region75: #{tpu_custom_call.1} parent=1 // pred_check_branch
      %108 = sbr.rel (0) target = $region77
    $region76: #{tpu_custom_call.1} parent=1 // pred_region
      %109 = dma.done [#allocation9], 16
    $region77: #{tpu_custom_call.1} parent=1 // pred_fallthru
      _
    %v111 = vld [vmem:[%s0] sm:$0xff]
    %v112 = vpack.c.bf16 %v111, %v111
    %v113 = vld [vmem:[%s2] sm:$0xf]
    %v114 = vld [vmem:[%s3] sm:$0x1]
    %v116 = vlaneseq
    %v117 = vshrl.u32 %v116, 7
    %v118 = vsub.s32 0, %v117
    %v119 = vrot.slane %v114, %v118
    %vm121 = vcmask 64512
    %v123 = vsel %vm121, %v112, 0
    %vm125 = vcmask 1043456
    %v127 = vsel %vm125, %v113, 0
    %129 = vmatprep.subr.bf16.mxu0 0
    %130 = vmatpush1.bf16.msra.mxu0 %v127
    %131 = vmatprep.subr.bf16.mxu0 0
    %132 = vmatpush1.bf16.msra.mxu0 0
    %133 = vmatprep.subr.bf16.mxu0 0
    %134 = vmatpush1.bf16.msra.mxu0 0
    %135 = vmatprep.subr.bf16.mxu0 0
    %136 = vmatpush1.bf16.msra.mxu0 0
    %137 = vmatprep.subr.bf16.mxu0 0
    %138 = vmatpush1.bf16.msra.mxu0 0
    %139 = vmatprep.subr.bf16.mxu0 0
    %140 = vmatpush1.bf16.msra.mxu0 0
    %141 = vmatprep.subr.bf16.mxu0 0
    %142 = vmatpush1.bf16.msra.mxu0 0
    %143 = vmatprep.subr.bf16.mxu0 0
    %144 = vmatpush1.bf16.msra.mxu0 0
    %145 = vmatprep.subr.bf16.mxu0 0
    %146 = vmatpush1.bf16.msra.mxu0 0
    %147 = vmatprep.subr.bf16.mxu0 0
    %148 = vmatpush1.bf16.msra.mxu0 0
    %149 = vmatprep.subr.bf16.mxu0 0
    %150 = vmatpush1.bf16.msra.mxu0 0
    %151 = vmatprep.subr.bf16.mxu0 0
    %152 = vmatpush1.bf16.msra.mxu0 0
    %153 = vmatprep.subr.bf16.mxu0 0
    %154 = vmatpush1.bf16.msra.mxu0 0
    %155 = vmatprep.subr.bf16.mxu0 0
    %156 = vmatpush1.bf16.msra.mxu0 0
    %157 = vmatprep.subr.bf16.mxu0 0
    %158 = vmatpush1.bf16.msra.mxu0 0
    %159 = vmatprep.subr.bf16.mxu0 0
    %160 = vmatpush1.bf16.msra.mxu0 0
    %161 = vmatprep.mubr.bf16.mxu0 0
    %162 = vmatmul.mubr.bf16.gmra.mrb[0].mxu0 %v123
    %v163 = vpop.f32.mrb[0].mxu0
    %v164 = vadd.f32 %v119, %v163
    %v165 = vpop.f32.mrb[0].mxu0
    %v166 = vpop.f32.mrb[0].mxu0
    %v167 = vpop.f32.mrb[0].mxu0
    %168 = vdwg.mxu0
    %v169 = vtanh.pop %v164
    %v170 = vpack.c.bf16 %v169, %v169
    %v171 = vld [vmem:[%s4] sm:$0xf]
    %v172 = vld [vmem:[%s4 + $0x4] sm:$0xf]
    %v173 = vld [vmem:[%s4 + $0x8] sm:$0xf]
    %v174 = vld [vmem:[%s4 + $0xc] sm:$0xf]
    %v175 = vld [vmem:[%s4 + $0x10] sm:$0xf]
    %v176 = vld [vmem:[%s4 + $0x14] sm:$0xf]
    %v177 = vld [vmem:[%s4 + $0x18] sm:$0xf]
    %v178 = vld [vmem:[%s4 + $0x1c] sm:$0xf]
    %v179 = vld [vmem:[#allocation5] sm:$0x1]
    %v181 = vlaneseq
    %v182 = vshrl.u32 %v181, 7
    %v183 = vsub.s32 0, %v182
    %v184 = vrot.slane %v179, %v183
    %v194 = vunpack.c.l.b16 %v171
    %v195 = vunpack.c.l.b16 %v172
    %v196 = vunpack.c.l.b16 %v173
    %v197 = vunpack.c.l.b16 %v174
    %v198 = vunpack.c.l.b16 %v175
    %v199 = vunpack.c.l.b16 %v176
    %v200 = vunpack.c.l.b16 %v177
    %v201 = vunpack.c.l.b16 %v178
    %v202 = vpack.c.b16 %v195, %v194
    %v203 = vpack.c.b16 %v197, %v196
    %v204 = vpack.c.b16 %v199, %v198
    %v205 = vpack.c.b16 %v201, %v200
    %vm210 = vcmask 523264
    %v212 = vsel %vm210, %v170, 0
    %214 = vmatprep.subr.bf16.mxu0 0
    %215 = vmatpush1.bf16.msra.mxu0 %v202
    %216 = vmatprep.subr.bf16.mxu0 0
    %217 = vmatpush1.bf16.msra.mxu0 %v203
    %218 = vmatprep.subr.bf16.mxu0 0
    %219 = vmatpush1.bf16.msra.mxu0 %v204
    %220 = vmatprep.subr.bf16.mxu0 0
    %221 = vmatpush1.bf16.msra.mxu0 %v205
    %222 = vmatprep.subr.bf16.mxu0 0
    %223 = vmatpush1.bf16.msra.mxu0 0
    %224 = vmatprep.subr.bf16.mxu0 0
    %225 = vmatpush1.bf16.msra.mxu0 0
    %226 = vmatprep.subr.bf16.mxu0 0
    %227 = vmatpush1.bf16.msra.mxu0 0
    %228 = vmatprep.subr.bf16.mxu0 0
    %229 = vmatpush1.bf16.msra.mxu0 0
    %230 = vmatprep.subr.bf16.mxu0 0
    %231 = vmatpush1.bf16.msra.mxu0 0
    %232 = vmatprep.subr.bf16.mxu0 0
    %233 = vmatpush1.bf16.msra.mxu0 0
    %234 = vmatprep.subr.bf16.mxu0 0
    %235 = vmatpush1.bf16.msra.mxu0 0
    %236 = vmatprep.subr.bf16.mxu0 0
    %237 = vmatpush1.bf16.msra.mxu0 0
    %238 = vmatprep.subr.bf16.mxu0 0
    %239 = vmatpush1.bf16.msra.mxu0 0
    %240 = vmatprep.subr.bf16.mxu0 0
    %241 = vmatpush1.bf16.msra.mxu0 0
    %242 = vmatprep.subr.bf16.mxu0 0
    %243 = vmatpush1.bf16.msra.mxu0 0
    %244 = vmatprep.subr.bf16.mxu0 0
    %245 = vmatpush1.bf16.msra.mxu0 0
    %246 = vmatprep.mubr.bf16.mxu0 0
    %247 = vmatmul.mubr.bf16.gmra.mrb[0].mxu0 %v212
    %v248 = vpop.f32.mrb[0].mxu0
    %v249 = vadd.f32 %v184, %v248
    %v250 = vpop.f32.mrb[0].mxu0
    %v251 = vpop.f32.mrb[0].mxu0
    %v252 = vpop.f32.mrb[0].mxu0
    %253 = vdwg.mxu0
    %v254 = vtanh.pop %v249
    %v255 = vld [vmem:[#allocation2] sm:$0xff]
    %v256 = vld [vmem:[#allocation2 + $0x8] sm:$0xff]
    %v257 = vld [vmem:[#allocation2 + $0x10] sm:$0xff]
    %v258 = vld [vmem:[#allocation2 + $0x18] sm:$0xff]
    %v259 = vld [vmem:[#allocation2 + $0x20] sm:$0xff]
    %v260 = vld [vmem:[#allocation2 + $0x28] sm:$0xff]
    %v261 = vld [vmem:[#allocation2 + $0x30] sm:$0xff]
    %v262 = vld [vmem:[#allocation2 + $0x38] sm:$0xff]
    %v271 = vcombine.low %v255, %v257
    %v272 = vcombine.high %v255, %v257
    %v273 = vcombine.low %v259, %v261
    %v274 = vcombine.high %v259, %v261
    %v276 = vunpack.c.l.s4 1983009808
    %v277 = vunpack.c.0.s8 %v276
    %v278 = vlaneseq
    %v279 = vshrl.u32 %v278, 7
    %v280 = vsub.s32 %v277, %v279
    %v281 = vrot.slane %v271, %v280
    %v283 = vunpack.c.l.s4 1983009808
    %v284 = vunpack.c.0.s8 %v283
    %v285 = vlaneseq
    %v286 = vshrl.u32 %v285, 7
    %v287 = vsub.s32 %v284, %v286
    %v288 = vrot.slane %v272, %v287
    %v290 = vunpack.c.l.s4 1983009808
    %v291 = vunpack.c.0.s8 %v290
    %v292 = vlaneseq
    %v293 = vshrl.u32 %v292, 7
    %v294 = vsub.s32 %v291, %v293
    %v295 = vrot.slane %v273, %v294
    %v297 = vunpack.c.l.s4 1983009808
    %v298 = vunpack.c.0.s8 %v297
    %v299 = vlaneseq
    %v300 = vshrl.u32 %v299, 7
    %v301 = vsub.s32 %v298, %v300
    %v302 = vrot.slane %v274, %v301
    %v303 = vcombine.low %v281, %v295
    %v304 = vcombine.high %v281, %v295
    %v305 = vcombine.low %v288, %v302
    %v306 = vcombine.high %v288, %v302
    %v307 = vcombine.low %v256, %v258
    %v308 = vcombine.high %v256, %v258
    %v309 = vcombine.low %v260, %v262
    %v310 = vcombine.high %v260, %v262
    %v312 = vunpack.c.l.s4 1983009808
    %v313 = vunpack.c.0.s8 %v312
    %v314 = vlaneseq
    %v315 = vshrl.u32 %v314, 7
    %v316 = vsub.s32 %v313, %v315
    %v317 = vrot.slane %v307, %v316
    %v319 = vunpack.c.l.s4 1983009808
    %v320 = vunpack.c.0.s8 %v319
    %v321 = vlaneseq
    %v322 = vshrl.u32 %v321, 7
    %v323 = vsub.s32 %v320, %v322
    %v324 = vrot.slane %v308, %v323
    %v326 = vunpack.c.l.s4 1983009808
    %v327 = vunpack.c.0.s8 %v326
    %v328 = vlaneseq
    %v329 = vshrl.u32 %v328, 7
    %v330 = vsub.s32 %v327, %v329
    %v331 = vrot.slane %v309, %v330
    %v333 = vunpack.c.l.s4 1983009808
    %v334 = vunpack.c.0.s8 %v333
    %v335 = vlaneseq
    %v336 = vshrl.u32 %v335, 7
    %v337 = vsub.s32 %v334, %v336
    %v338 = vrot.slane %v310, %v337
    %v339 = vcombine.low %v317, %v331
    %v340 = vcombine.high %v317, %v331
    %v341 = vcombine.low %v324, %v338
    %v342 = vcombine.high %v324, %v338
    %v351 = vpack.c.bf16 %v303, %v303
    %v352 = vpack.c.bf16 %v304, %v304
    %v353 = vpack.c.bf16 %v305, %v305
    %v354 = vpack.c.bf16 %v306, %v306
    %v355 = vpack.c.bf16 %v339, %v339
    %v356 = vpack.c.bf16 %v340, %v340
    %v357 = vpack.c.bf16 %v341, %v341
    %v358 = vpack.c.bf16 %v342, %v342
    %v359 = vld [vmem:[#allocation7] sm:$0xff]
    %v360 = vld [vmem:[#allocation7 + $0x8] sm:$0xff]
    %v361 = vld [vmem:[#allocation7 + $0x10] sm:$0xff]
    %v362 = vld [vmem:[#allocation7 + $0x18] sm:$0xff]
    %v363 = vld [vmem:[#allocation7 + $0x20] sm:$0xff]
    %v364 = vld [vmem:[#allocation7 + $0x28] sm:$0xff]
    %v365 = vld [vmem:[#allocation7 + $0x30] sm:$0xff]
    %v366 = vld [vmem:[#allocation7 + $0x38] sm:$0xff]
    %v367 = vld [vmem:[#allocation7 + $0x40] sm:$0xff]
    %v368 = vld [vmem:[#allocation7 + $0x48] sm:$0xff]
    %v369 = vld [vmem:[#allocation7 + $0x50] sm:$0xff]
    %v370 = vld [vmem:[#allocation7 + $0x58] sm:$0xff]
    %v371 = vld [vmem:[#allocation7 + $0x60] sm:$0xff]
    %v372 = vld [vmem:[#allocation7 + $0x68] sm:$0xff]
    %v373 = vld [vmem:[#allocation7 + $0x70] sm:$0xff]
    %v374 = vld [vmem:[#allocation7 + $0x78] sm:$0xff]
    %v375 = vld [vmem:[#allocation7 + $0x80] sm:$0xff]
    %v376 = vld [vmem:[#allocation7 + $0x88] sm:$0xff]
    %v377 = vld [vmem:[#allocation7 + $0x90] sm:$0xff]
    %v378 = vld [vmem:[#allocation7 + $0x98] sm:$0xff]
    %v379 = vld [vmem:[#allocation7 + $0xa0] sm:$0xff]
    %v380 = vld [vmem:[#allocation7 + $0xa8] sm:$0xff]
    %v381 = vld [vmem:[#allocation7 + $0xb0] sm:$0xff]
    %v382 = vld [vmem:[#allocation7 + $0xb8] sm:$0xff]
    %v383 = vld [vmem:[#allocation7 + $0xc0] sm:$0xff]
    %v384 = vld [vmem:[#allocation7 + $0xc8] sm:$0xff]
    %v385 = vld [vmem:[#allocation7 + $0xd0] sm:$0xff]
    %v386 = vld [vmem:[#allocation7 + $0xd8] sm:$0xff]
    %v387 = vld [vmem:[#allocation7 + $0xe0] sm:$0xff]
    %v388 = vld [vmem:[#allocation7 + $0xe8] sm:$0xff]
    %v389 = vld [vmem:[#allocation7 + $0xf0] sm:$0xff]
    %v390 = vld [vmem:[#allocation7 + $0xf8] sm:$0xff]
    %v391 = vld [vmem:[#allocation7 + $0x100] sm:$0xff]
    %v392 = vld [vmem:[#allocation7 + $0x108] sm:$0xff]
    %v393 = vld [vmem:[#allocation7 + $0x110] sm:$0xff]
    %v394 = vld [vmem:[#allocation7 + $0x118] sm:$0xff]
    %v395 = vld [vmem:[#allocation7 + $0x120] sm:$0xff]
    %v396 = vld [vmem:[#allocation7 + $0x128] sm:$0xff]
    %v397 = vld [vmem:[#allocation7 + $0x130] sm:$0xff]
    %v398 = vld [vmem:[#allocation7 + $0x138] sm:$0xff]
    %v399 = vld [vmem:[#allocation7 + $0x140] sm:$0xff]
    %v400 = vld [vmem:[#allocation7 + $0x148] sm:$0xff]
    %v401 = vld [vmem:[#allocation7 + $0x150] sm:$0xff]
    %v402 = vld [vmem:[#allocation7 + $0x158] sm:$0xff]
    %v403 = vld [vmem:[#allocation7 + $0x160] sm:$0xff]
    %v404 = vld [vmem:[#allocation7 + $0x168] sm:$0xff]
    %v405 = vld [vmem:[#allocation7 + $0x170] sm:$0xff]
    %v406 = vld [vmem:[#allocation7 + $0x178] sm:$0xff]
    %v407 = vld [vmem:[#allocation7 + $0x180] sm:$0xff]
    %v408 = vld [vmem:[#allocation7 + $0x188] sm:$0xff]
    %v409 = vld [vmem:[#allocation7 + $0x190] sm:$0xff]
    %v410 = vld [vmem:[#allocation7 + $0x198] sm:$0xff]
    %v411 = vld [vmem:[#allocation7 + $0x1a0] sm:$0xff]
    %v412 = vld [vmem:[#allocation7 + $0x1a8] sm:$0xff]
    %v413 = vld [vmem:[#allocation7 + $0x1b0] sm:$0xff]
    %v414 = vld [vmem:[#allocation7 + $0x1b8] sm:$0xff]
    %v415 = vld [vmem:[#allocation7 + $0x1c0] sm:$0xff]
    %v416 = vld [vmem:[#allocation7 + $0x1c8] sm:$0xff]
    %v417 = vld [vmem:[#allocation7 + $0x1d0] sm:$0xff]
    %v418 = vld [vmem:[#allocation7 + $0x1d8] sm:$0xff]
    %v419 = vld [vmem:[#allocation7 + $0x1e0] sm:$0xff]
    %v420 = vld [vmem:[#allocation7 + $0x1e8] sm:$0xff]
    %v421 = vld [vmem:[#allocation7 + $0x1f0] sm:$0xff]
    %v422 = vld [vmem:[#allocation7 + $0x1f8] sm:$0xff]
    %v423 = vld [vmem:[#allocation7 + $0x200] sm:$0xff]
    %v424 = vld [vmem:[#allocation7 + $0x208] sm:$0xff]
    %v425 = vld [vmem:[#allocation7 + $0x210] sm:$0xff]
    %v426 = vld [vmem:[#allocation7 + $0x218] sm:$0xff]
    %v427 = vld [vmem:[#allocation7 + $0x220] sm:$0xff]
    %v428 = vld [vmem:[#allocation7 + $0x228] sm:$0xff]
    %v429 = vld [vmem:[#allocation7 + $0x230] sm:$0xff]
    %v430 = vld [vmem:[#allocation7 + $0x238] sm:$0xff]
    %v431 = vld [vmem:[#allocation7 + $0x240] sm:$0xff]
    %v432 = vld [vmem:[#allocation7 + $0x248] sm:$0xff]
    %v433 = vld [vmem:[#allocation7 + $0x250] sm:$0xff]
    %v434 = vld [vmem:[#allocation7 + $0x258] sm:$0xff]
    %v435 = vld [vmem:[#allocation7 + $0x260] sm:$0xff]
    %v436 = vld [vmem:[#allocation7 + $0x268] sm:$0xff]
    %v437 = vld [vmem:[#allocation7 + $0x270] sm:$0xff]
    %v438 = vld [vmem:[#allocation7 + $0x278] sm:$0xff]
    %v439 = vld [vmem:[#allocation7 + $0x280] sm:$0xff]
    %v440 = vld [vmem:[#allocation7 + $0x288] sm:$0xff]
    %v441 = vld [vmem:[#allocation7 + $0x290] sm:$0xff]
    %v442 = vld [vmem:[#allocation7 + $0x298] sm:$0xff]
    %v443 = vld [vmem:[#allocation7 + $0x2a0] sm:$0xff]
    %v444 = vld [vmem:[#allocation7 + $0x2a8] sm:$0xff]
    %v445 = vld [vmem:[#allocation7 + $0x2b0] sm:$0xff]
    %v446 = vld [vmem:[#allocation7 + $0x2b8] sm:$0xff]
    %v447 = vld [vmem:[#allocation7 + $0x2c0] sm:$0xff]
    %v448 = vld [vmem:[#allocation7 + $0x2c8] sm:$0xff]
    %v449 = vld [vmem:[#allocation7 + $0x2d0] sm:$0xff]
    %v450 = vld [vmem:[#allocation7 + $0x2d8] sm:$0xff]
    %v451 = vld [vmem:[#allocation7 + $0x2e0] sm:$0xff]
    %v452 = vld [vmem:[#allocation7 + $0x2e8] sm:$0xff]
    %v453 = vld [vmem:[#allocation7 + $0x2f0] sm:$0xff]
    %v454 = vld [vmem:[#allocation7 + $0x2f8] sm:$0xff]
    %v455 = vld [vmem:[#allocation7 + $0x300] sm:$0xff]
    %v456 = vld [vmem:[#allocation7 + $0x308] sm:$0xff]
    %v457 = vld [vmem:[#allocation7 + $0x310] sm:$0xff]
    %v458 = vld [vmem:[#allocation7 + $0x318] sm:$0xff]
    %v459 = vld [vmem:[#allocation7 + $0x320] sm:$0xff]
    %v460 = vld [vmem:[#allocation7 + $0x328] sm:$0xff]
    %v461 = vld [vmem:[#allocation7 + $0x330] sm:$0xff]
    %v462 = vld [vmem:[#allocation7 + $0x338] sm:$0xff]
    %v463 = vld [vmem:[#allocation7 + $0x340] sm:$0xff]
    %v464 = vld [vmem:[#allocation7 + $0x348] sm:$0xff]
    %v465 = vld [vmem:[#allocation7 + $0x350] sm:$0xff]
    %v466 = vld [vmem:[#allocation7 + $0x358] sm:$0xff]
    %v467 = vld [vmem:[#allocation7 + $0x360] sm:$0xff]
    %v468 = vld [vmem:[#allocation7 + $0x368] sm:$0xff]
    %v469 = vld [vmem:[#allocation7 + $0x370] sm:$0xff]
    %v470 = vld [vmem:[#allocation7 + $0x378] sm:$0xff]
    %v471 = vld [vmem:[#allocation7 + $0x380] sm:$0xff]
    %v472 = vld [vmem:[#allocation7 + $0x388] sm:$0xff]
    %v473 = vld [vmem:[#allocation7 + $0x390] sm:$0xff]
    %v474 = vld [vmem:[#allocation7 + $0x398] sm:$0xff]
    %v475 = vld [vmem:[#allocation7 + $0x3a0] sm:$0xff]
    %v476 = vld [vmem:[#allocation7 + $0x3a8] sm:$0xff]
    %v477 = vld [vmem:[#allocation7 + $0x3b0] sm:$0xff]
    %v478 = vld [vmem:[#allocation7 + $0x3b8] sm:$0xff]
    %v479 = vld [vmem:[#allocation8] sm:$0x3]
    %v481 = vlaneseq
    %v482 = vshrl.u32 %v481, 7
    %v483 = vsub.s32 0, %v482
    %v484 = vrot.slane %v479, %v483
    %v485 = vlaneseq
    %v486 = vshrl.u32 %v485, 7
    %v487 = vsub.s32 1, %v486
    %v488 = vrot.slane %v479, %v487
    %v611 = vunpack.c.l.b16 %v359
    %v612 = vunpack.c.h.b16 %v359
    %v613 = vunpack.c.l.b16 %v360
    %v614 = vunpack.c.h.b16 %v360
    %v615 = vunpack.c.l.b16 %v361
    %v616 = vunpack.c.h.b16 %v361
    %v617 = vunpack.c.l.b16 %v362
    %v618 = vunpack.c.h.b16 %v362
    %v619 = vunpack.c.l.b16 %v363
    %v620 = vunpack.c.h.b16 %v363
    %v621 = vunpack.c.l.b16 %v364
    %v622 = vunpack.c.h.b16 %v364
    %v623 = vunpack.c.l.b16 %v365
    %v624 = vunpack.c.h.b16 %v365
    %v625 = vunpack.c.l.b16 %v366
    %v626 = vunpack.c.h.b16 %v366
    %v627 = vunpack.c.l.b16 %v367
    %v628 = vunpack.c.h.b16 %v367
    %v629 = vunpack.c.l.b16 %v368
    %v630 = vunpack.c.h.b16 %v368
    %v631 = vunpack.c.l.b16 %v369
    %v632 = vunpack.c.h.b16 %v369
    %v633 = vunpack.c.l.b16 %v370
    %v634 = vunpack.c.h.b16 %v370
    %v635 = vunpack.c.l.b16 %v371
    %v636 = vunpack.c.h.b16 %v371
    %v637 = vunpack.c.l.b16 %v372
    %v638 = vunpack.c.h.b16 %v372
    %v639 = vunpack.c.l.b16 %v373
    %v640 = vunpack.c.h.b16 %v373
    %v641 = vunpack.c.l.b16 %v374
    %v642 = vunpack.c.h.b16 %v374
    %v643 = vunpack.c.l.b16 %v375
    %v644 = vunpack.c.h.b16 %v375
    %v645 = vunpack.c.l.b16 %v376
    %v646 = vunpack.c.h.b16 %v376
    %v647 = vunpack.c.l.b16 %v377
    %v648 = vunpack.c.h.b16 %v377
    %v649 = vunpack.c.l.b16 %v378
    %v650 = vunpack.c.h.b16 %v378
    %v651 = vunpack.c.l.b16 %v379
    %v652 = vunpack.c.h.b16 %v379
    %v653 = vunpack.c.l.b16 %v380
    %v654 = vunpack.c.h.b16 %v380
    %v655 = vunpack.c.l.b16 %v381
    %v656 = vunpack.c.h.b16 %v381
    %v657 = vunpack.c.l.b16 %v382
    %v658 = vunpack.c.h.b16 %v382
    %v659 = vunpack.c.l.b16 %v383
    %v660 = vunpack.c.h.b16 %v383
    %v661 = vunpack.c.l.b16 %v384
    %v662 = vunpack.c.h.b16 %v384
    %v663 = vunpack.c.l.b16 %v385
    %v664 = vunpack.c.h.b16 %v385
    %v665 = vunpack.c.l.b16 %v386
    %v666 = vunpack.c.h.b16 %v386
    %v667 = vunpack.c.l.b16 %v387
    %v668 = vunpack.c.h.b16 %v387
    %v669 = vunpack.c.l.b16 %v388
    %v670 = vunpack.c.h.b16 %v388
    %v671 = vunpack.c.l.b16 %v389
    %v672 = vunpack.c.h.b16 %v389
    %v673 = vunpack.c.l.b16 %v390
    %v674 = vunpack.c.h.b16 %v390
    %v675 = vunpack.c.l.b16 %v391
    %v676 = vunpack.c.h.b16 %v391
    %v677 = vunpack.c.l.b16 %v392
    %v678 = vunpack.c.h.b16 %v392
    %v679 = vunpack.c.l.b16 %v393
    %v680 = vunpack.c.h.b16 %v393
    %v681 = vunpack.c.l.b16 %v394
    %v682 = vunpack.c.h.b16 %v394
    %v683 = vunpack.c.l.b16 %v395
    %v684 = vunpack.c.h.b16 %v395
    %v685 = vunpack.c.l.b16 %v396
    %v686 = vunpack.c.h.b16 %v396
    %v687 = vunpack.c.l.b16 %v397
    %v688 = vunpack.c.h.b16 %v397
    %v689 = vunpack.c.l.b16 %v398
    %v690 = vunpack.c.h.b16 %v398
    %v691 = vunpack.c.l.b16 %v399
    %v692 = vunpack.c.h.b16 %v399
    %v693 = vunpack.c.l.b16 %v400
    %v694 = vunpack.c.h.b16 %v400
    %v695 = vunpack.c.l.b16 %v401
    %v696 = vunpack.c.h.b16 %v401
    %v697 = vunpack.c.l.b16 %v402
    %v698 = vunpack.c.h.b16 %v402
    %v699 = vunpack.c.l.b16 %v403
    %v700 = vunpack.c.h.b16 %v403
    %v701 = vunpack.c.l.b16 %v404
    %v702 = vunpack.c.h.b16 %v404
    %v703 = vunpack.c.l.b16 %v405
    %v704 = vunpack.c.h.b16 %v405
    %v705 = vunpack.c.l.b16 %v406
    %v706 = vunpack.c.h.b16 %v406
    %v707 = vunpack.c.l.b16 %v407
    %v708 = vunpack.c.h.b16 %v407
    %v709 = vunpack.c.l.b16 %v408
    %v710 = vunpack.c.h.b16 %v408
    %v711 = vunpack.c.l.b16 %v409
    %v712 = vunpack.c.h.b16 %v409
    %v713 = vunpack.c.l.b16 %v410
    %v714 = vunpack.c.h.b16 %v410
    %v715 = vunpack.c.l.b16 %v411
    %v716 = vunpack.c.h.b16 %v411
    %v717 = vunpack.c.l.b16 %v412
    %v718 = vunpack.c.h.b16 %v412
    %v719 = vunpack.c.l.b16 %v413
    %v720 = vunpack.c.h.b16 %v413
    %v721 = vunpack.c.l.b16 %v414
    %v722 = vunpack.c.h.b16 %v414
    %v723 = vunpack.c.l.b16 %v415
    %v724 = vunpack.c.h.b16 %v415
    %v725 = vunpack.c.l.b16 %v416
    %v726 = vunpack.c.h.b16 %v416
    %v727 = vunpack.c.l.b16 %v417
    %v728 = vunpack.c.h.b16 %v417
    %v729 = vunpack.c.l.b16 %v418
    %v730 = vunpack.c.h.b16 %v418
    %v731 = vunpack.c.l.b16 %v419
    %v732 = vunpack.c.h.b16 %v419
    %v733 = vunpack.c.l.b16 %v420
    %v734 = vunpack.c.h.b16 %v420
    %v735 = vunpack.c.l.b16 %v421
    %v736 = vunpack.c.h.b16 %v421
    %v737 = vunpack.c.l.b16 %v422
    %v738 = vunpack.c.h.b16 %v422
    %v739 = vunpack.c.l.b16 %v423
    %v740 = vunpack.c.h.b16 %v423
    %v741 = vunpack.c.l.b16 %v424
    %v742 = vunpack.c.h.b16 %v424
    %v743 = vunpack.c.l.b16 %v425
    %v744 = vunpack.c.h.b16 %v425
    %v745 = vunpack.c.l.b16 %v426
    %v746 = vunpack.c.h.b16 %v426
    %v747 = vunpack.c.l.b16 %v427
    %v748 = vunpack.c.h.b16 %v427
    %v749 = vunpack.c.l.b16 %v428
    %v750 = vunpack.c.h.b16 %v428
    %v751 = vunpack.c.l.b16 %v429
    %v752 = vunpack.c.h.b16 %v429
    %v753 = vunpack.c.l.b16 %v430
    %v754 = vunpack.c.h.b16 %v430
    %v755 = vunpack.c.l.b16 %v431
    %v756 = vunpack.c.h.b16 %v431
    %v757 = vunpack.c.l.b16 %v432
    %v758 = vunpack.c.h.b16 %v432
    %v759 = vunpack.c.l.b16 %v433
    %v760 = vunpack.c.h.b16 %v433
    %v761 = vunpack.c.l.b16 %v434
    %v762 = vunpack.c.h.b16 %v434
    %v763 = vunpack.c.l.b16 %v435
    %v764 = vunpack.c.h.b16 %v435
    %v765 = vunpack.c.l.b16 %v436
    %v766 = vunpack.c.h.b16 %v436
    %v767 = vunpack.c.l.b16 %v437
    %v768 = vunpack.c.h.b16 %v437
    %v769 = vunpack.c.l.b16 %v438
    %v770 = vunpack.c.h.b16 %v438
    %v771 = vunpack.c.l.b16 %v439
    %v772 = vunpack.c.h.b16 %v439
    %v773 = vunpack.c.l.b16 %v440
    %v774 = vunpack.c.h.b16 %v440
    %v775 = vunpack.c.l.b16 %v441
    %v776 = vunpack.c.h.b16 %v441
    %v777 = vunpack.c.l.b16 %v442
    %v778 = vunpack.c.h.b16 %v442
    %v779 = vunpack.c.l.b16 %v443
    %v780 = vunpack.c.h.b16 %v443
    %v781 = vunpack.c.l.b16 %v444
    %v782 = vunpack.c.h.b16 %v444
    %v783 = vunpack.c.l.b16 %v445
    %v784 = vunpack.c.h.b16 %v445
    %v785 = vunpack.c.l.b16 %v446
    %v786 = vunpack.c.h.b16 %v446
    %v787 = vunpack.c.l.b16 %v447
    %v788 = vunpack.c.h.b16 %v447
    %v789 = vunpack.c.l.b16 %v448
    %v790 = vunpack.c.h.b16 %v448
    %v791 = vunpack.c.l.b16 %v449
    %v792 = vunpack.c.h.b16 %v449
    %v793 = vunpack.c.l.b16 %v450
    %v794 = vunpack.c.h.b16 %v450
    %v795 = vunpack.c.l.b16 %v451
    %v796 = vunpack.c.h.b16 %v451
    %v797 = vunpack.c.l.b16 %v452
    %v798 = vunpack.c.h.b16 %v452
    %v799 = vunpack.c.l.b16 %v453
    %v800 = vunpack.c.h.b16 %v453
    %v801 = vunpack.c.l.b16 %v454
    %v802 = vunpack.c.h.b16 %v454
    %v803 = vunpack.c.l.b16 %v455
    %v804 = vunpack.c.h.b16 %v455
    %v805 = vunpack.c.l.b16 %v456
    %v806 = vunpack.c.h.b16 %v456
    %v807 = vunpack.c.l.b16 %v457
    %v808 = vunpack.c.h.b16 %v457
    %v809 = vunpack.c.l.b16 %v458
    %v810 = vunpack.c.h.b16 %v458
    %v811 = vunpack.c.l.b16 %v459
    %v812 = vunpack.c.h.b16 %v459
    %v813 = vunpack.c.l.b16 %v460
    %v814 = vunpack.c.h.b16 %v460
    %v815 = vunpack.c.l.b16 %v461
    %v816 = vunpack.c.h.b16 %v461
    %v817 = vunpack.c.l.b16 %v462
    %v818 = vunpack.c.h.b16 %v462
    %v819 = vunpack.c.l.b16 %v463
    %v820 = vunpack.c.h.b16 %v463
    %v821 = vunpack.c.l.b16 %v464
    %v822 = vunpack.c.h.b16 %v464
    %v823 = vunpack.c.l.b16 %v465
    %v824 = vunpack.c.h.b16 %v465
    %v825 = vunpack.c.l.b16 %v466
    %v826 = vunpack.c.h.b16 %v466
    %v827 = vunpack.c.l.b16 %v467
    %v828 = vunpack.c.h.b16 %v467
    %v829 = vunpack.c.l.b16 %v468
    %v830 = vunpack.c.h.b16 %v468
    %v831 = vunpack.c.l.b16 %v469
    %v832 = vunpack.c.h.b16 %v469
    %v833 = vunpack.c.l.b16 %v470
    %v834 = vunpack.c.h.b16 %v470
    %v835 = vunpack.c.l.b16 %v471
    %v836 = vunpack.c.h.b16 %v471
    %v837 = vunpack.c.l.b16 %v472
    %v838 = vunpack.c.h.b16 %v472
    %v839 = vunpack.c.l.b16 %v473
    %v840 = vunpack.c.h.b16 %v473
    %v841 = vunpack.c.l.b16 %v474
    %v842 = vunpack.c.h.b16 %v474
    %v843 = vunpack.c.l.b16 %v475
    %v844 = vunpack.c.h.b16 %v475
    %v845 = vunpack.c.l.b16 %v476
    %v846 = vunpack.c.h.b16 %v476
    %v847 = vunpack.c.l.b16 %v477
    %v848 = vunpack.c.h.b16 %v477
    %v849 = vunpack.c.l.b16 %v478
    %v850 = vunpack.c.h.b16 %v478
    %v851 = vpack.c.b16 %v613, %v611
    %v852 = vpack.c.b16 %v614, %v612
    %v853 = vpack.c.b16 %v617, %v615
    %v854 = vpack.c.b16 %v618, %v616
    %v855 = vpack.c.b16 %v621, %v619
    %v856 = vpack.c.b16 %v622, %v620
    %v857 = vpack.c.b16 %v625, %v623
    %v858 = vpack.c.b16 %v626, %v624
    %v859 = vpack.c.b16 %v629, %v627
    %v860 = vpack.c.b16 %v630, %v628
    %v861 = vpack.c.b16 %v633, %v631
    %v862 = vpack.c.b16 %v634, %v632
    %v863 = vpack.c.b16 %v637, %v635
    %v864 = vpack.c.b16 %v638, %v636
    %v865 = vpack.c.b16 %v641, %v639
    %v866 = vpack.c.b16 %v642, %v640
    %v867 = vpack.c.b16 %v645, %v643
    %v868 = vpack.c.b16 %v646, %v644
    %v869 = vpack.c.b16 %v649, %v647
    %v870 = vpack.c.b16 %v650, %v648
    %v871 = vpack.c.b16 %v653, %v651
    %v872 = vpack.c.b16 %v654, %v652
    %v873 = vpack.c.b16 %v657, %v655
    %v874 = vpack.c.b16 %v658, %v656
    %v875 = vpack.c.b16 %v661, %v659
    %v876 = vpack.c.b16 %v662, %v660
    %v877 = vpack.c.b16 %v665, %v663
    %v878 = vpack.c.b16 %v666, %v664
    %v879 = vpack.c.b16 %v669, %v667
    %v880 = vpack.c.b16 %v670, %v668
    %v881 = vpack.c.b16 %v673, %v671
    %v882 = vpack.c.b16 %v674, %v672
    %v883 = vpack.c.b16 %v677, %v675
    %v884 = vpack.c.b16 %v678, %v676
    %v885 = vpack.c.b16 %v681, %v679
    %v886 = vpack.c.b16 %v682, %v680
    %v887 = vpack.c.b16 %v685, %v683
    %v888 = vpack.c.b16 %v686, %v684
    %v889 = vpack.c.b16 %v689, %v687
    %v890 = vpack.c.b16 %v690, %v688
    %v891 = vpack.c.b16 %v693, %v691
    %v892 = vpack.c.b16 %v694, %v692
    %v893 = vpack.c.b16 %v697, %v695
    %v894 = vpack.c.b16 %v698, %v696
    %v895 = vpack.c.b16 %v701, %v699
    %v896 = vpack.c.b16 %v702, %v700
    %v897 = vpack.c.b16 %v705, %v703
    %v898 = vpack.c.b16 %v706, %v704
    %v899 = vpack.c.b16 %v709, %v707
    %v900 = vpack.c.b16 %v710, %v708
    %v901 = vpack.c.b16 %v713, %v711
    %v902 = vpack.c.b16 %v714, %v712
    %v903 = vpack.c.b16 %v717, %v715
    %v904 = vpack.c.b16 %v718, %v716
    %v905 = vpack.c.b16 %v721, %v719
    %v906 = vpack.c.b16 %v722, %v720
    %v907 = vpack.c.b16 %v725, %v723
    %v908 = vpack.c.b16 %v726, %v724
    %v909 = vpack.c.b16 %v729, %v727
    %v910 = vpack.c.b16 %v730, %v728
    %v911 = vpack.c.b16 %v733, %v731
    %v912 = vpack.c.b16 %v734, %v732
    %v913 = vpack.c.b16 %v737, %v735
    %v914 = vpack.c.b16 %v738, %v736
    %v915 = vpack.c.b16 %v741, %v739
    %v916 = vpack.c.b16 %v742, %v740
    %v917 = vpack.c.b16 %v745, %v743
    %v918 = vpack.c.b16 %v746, %v744
    %v919 = vpack.c.b16 %v749, %v747
    %v920 = vpack.c.b16 %v750, %v748
    %v921 = vpack.c.b16 %v753, %v751
    %v922 = vpack.c.b16 %v754, %v752
    %v923 = vpack.c.b16 %v757, %v755
    %v924 = vpack.c.b16 %v758, %v756
    %v925 = vpack.c.b16 %v761, %v759
    %v926 = vpack.c.b16 %v762, %v760
    %v927 = vpack.c.b16 %v765, %v763
    %v928 = vpack.c.b16 %v766, %v764
    %v929 = vpack.c.b16 %v769, %v767
    %v930 = vpack.c.b16 %v770, %v768
    %v931 = vpack.c.b16 %v773, %v771
    %v932 = vpack.c.b16 %v774, %v772
    %v933 = vpack.c.b16 %v777, %v775
    %v934 = vpack.c.b16 %v778, %v776
    %v935 = vpack.c.b16 %v781, %v779
    %v936 = vpack.c.b16 %v782, %v780
    %v937 = vpack.c.b16 %v785, %v783
    %v938 = vpack.c.b16 %v786, %v784
    %v939 = vpack.c.b16 %v789, %v787
    %v940 = vpack.c.b16 %v790, %v788
    %v941 = vpack.c.b16 %v793, %v791
    %v942 = vpack.c.b16 %v794, %v792
    %v943 = vpack.c.b16 %v797, %v795
    %v944 = vpack.c.b16 %v798, %v796
    %v945 = vpack.c.b16 %v801, %v799
    %v946 = vpack.c.b16 %v802, %v800
    %v947 = vpack.c.b16 %v805, %v803
    %v948 = vpack.c.b16 %v806, %v804
    %v949 = vpack.c.b16 %v809, %v807
    %v950 = vpack.c.b16 %v810, %v808
    %v951 = vpack.c.b16 %v813, %v811
    %v952 = vpack.c.b16 %v814, %v812
    %v953 = vpack.c.b16 %v817, %v815
    %v954 = vpack.c.b16 %v818, %v816
    %v955 = vpack.c.b16 %v821, %v819
    %v956 = vpack.c.b16 %v822, %v820
    %v957 = vpack.c.b16 %v825, %v823
    %v958 = vpack.c.b16 %v826, %v824
    %v959 = vpack.c.b16 %v829, %v827
    %v960 = vpack.c.b16 %v830, %v828
    %v961 = vpack.c.b16 %v833, %v831
    %v962 = vpack.c.b16 %v834, %v832
    %v963 = vpack.c.b16 %v837, %v835
    %v964 = vpack.c.b16 %v838, %v836
    %v965 = vpack.c.b16 %v841, %v839
    %v966 = vpack.c.b16 %v842, %v840
    %v967 = vpack.c.b16 %v845, %v843
    %v968 = vpack.c.b16 %v846, %v844
    %v969 = vpack.c.b16 %v849, %v847
    %v970 = vpack.c.b16 %v850, %v848
    %v1092 = vsel %vm210, %v358, 0
    %1094 = vmatprep.subr.bf16.mxu0 %v852
    %1095 = vmatpush1.bf16.msra.mxu0 %v851
    %1096 = vmatprep.subr.bf16.mxu0 %v854
    %1097 = vmatpush1.bf16.msra.mxu0 %v853
    %1098 = vmatprep.subr.bf16.mxu0 %v856
    %1099 = vmatpush1.bf16.msra.mxu0 %v855
    %1100 = vmatprep.subr.bf16.mxu0 %v858
    %1101 = vmatpush1.bf16.msra.mxu0 %v857
    %1102 = vmatprep.subr.bf16.mxu0 %v860
    %1103 = vmatpush1.bf16.msra.mxu0 %v859
    %1104 = vmatprep.subr.bf16.mxu0 %v862
    %1105 = vmatpush1.bf16.msra.mxu0 %v861
    %1106 = vmatprep.subr.bf16.mxu0 %v864
    %1107 = vmatpush1.bf16.msra.mxu0 %v863
    %1108 = vmatprep.subr.bf16.mxu0 %v866
    %1109 = vmatpush1.bf16.msra.mxu0 %v865
    %1110 = vmatprep.subr.bf16.mxu0 %v868
    %1111 = vmatpush1.bf16.msra.mxu0 %v867
    %1112 = vmatprep.subr.bf16.mxu0 %v870
    %1113 = vmatpush1.bf16.msra.mxu0 %v869
    %1114 = vmatprep.subr.bf16.mxu0 %v872
    %1115 = vmatpush1.bf16.msra.mxu0 %v871
    %1116 = vmatprep.subr.bf16.mxu0 %v874
    %1117 = vmatpush1.bf16.msra.mxu0 %v873
    %1118 = vmatprep.subr.bf16.mxu0 %v876
    %1119 = vmatpush1.bf16.msra.mxu0 %v875
    %1120 = vmatprep.subr.bf16.mxu0 %v878
    %1121 = vmatpush1.bf16.msra.mxu0 %v877
    %1122 = vmatprep.subr.bf16.mxu0 %v880
    %1123 = vmatpush1.bf16.msra.mxu0 %v879
    %1124 = vmatprep.subr.bf16.mxu0 %v882
    %1125 = vmatpush1.bf16.msra.mxu0 %v881
    %1126 = vmatprep.mubr.bf16.mxu0 %v352
    %1127 = vmatmul.mubr.bf16.gmra.mrb[0].mxu0 %v351
    %v1128 = vpop.f32.mrb[0].mxu0
    %v1129 = vadd.f32 %v484, %v1128
    %v1130 = vpop.f32.mrb[0].mxu0
    %v1131 = vadd.f32 %v488, %v1130
    %v1132 = vpop.f32.mrb[0].mxu0
    %v1133 = vpop.f32.mrb[0].mxu0
    %1134 = vdwg.mxu0
    %1135 = vmatprep.subr.bf16.mxu0 %v884
    %1136 = vmatpush1.bf16.msra.mxu0 %v883
    %1137 = vmatprep.subr.bf16.mxu0 %v886
    %1138 = vmatpush1.bf16.msra.mxu0 %v885
    %1139 = vmatprep.subr.bf16.mxu0 %v888
    %1140 = vmatpush1.bf16.msra.mxu0 %v887
    %1141 = vmatprep.subr.bf16.mxu0 %v890
    %1142 = vmatpush1.bf16.msra.mxu0 %v889
    %1143 = vmatprep.subr.bf16.mxu0 %v892
    %1144 = vmatpush1.bf16.msra.mxu0 %v891
    %1145 = vmatprep.subr.bf16.mxu0 %v894
    %1146 = vmatpush1.bf16.msra.mxu0 %v893
    %1147 = vmatprep.subr.bf16.mxu0 %v896
    %1148 = vmatpush1.bf16.msra.mxu0 %v895
    %1149 = vmatprep.subr.bf16.mxu0 %v898
    %1150 = vmatpush1.bf16.msra.mxu0 %v897
    %1151 = vmatprep.subr.bf16.mxu0 %v900
    %1152 = vmatpush1.bf16.msra.mxu0 %v899
    %1153 = vmatprep.subr.bf16.mxu0 %v902
    %1154 = vmatpush1.bf16.msra.mxu0 %v901
    %1155 = vmatprep.subr.bf16.mxu0 %v904
    %1156 = vmatpush1.bf16.msra.mxu0 %v903
    %1157 = vmatprep.subr.bf16.mxu0 %v906
    %1158 = vmatpush1.bf16.msra.mxu0 %v905
    %1159 = vmatprep.subr.bf16.mxu0 %v908
    %1160 = vmatpush1.bf16.msra.mxu0 %v907
    %1161 = vmatprep.subr.bf16.mxu0 %v910
    %1162 = vmatpush1.bf16.msra.mxu0 %v909
    %1163 = vmatprep.subr.bf16.mxu0 %v912
    %1164 = vmatpush1.bf16.msra.mxu0 %v911
    %1165 = vmatprep.subr.bf16.mxu0 %v914
    %1166 = vmatpush1.bf16.msra.mxu0 %v913
    %1167 = vmatprep.mubr.bf16.mxu0 %v354
    %1168 = vmatmul.mubr.bf16.gmra.mrb[0].mxu0 %v353
    %v1169 = vpop.f32.mrb[0].mxu0
    %v1170 = vadd.f32 %v1129, %v1169
    %v1171 = vpop.f32.mrb[0].mxu0
    %v1172 = vadd.f32 %v1131, %v1171
    %v1173 = vpop.f32.mrb[0].mxu0
    %v1174 = vpop.f32.mrb[0].mxu0
    %1175 = vdwg.mxu0
    %1176 = vmatprep.subr.bf16.mxu0 %v916
    %1177 = vmatpush1.bf16.msra.mxu0 %v915
    %1178 = vmatprep.subr.bf16.mxu0 %v918
    %1179 = vmatpush1.bf16.msra.mxu0 %v917
    %1180 = vmatprep.subr.bf16.mxu0 %v920
    %1181 = vmatpush1.bf16.msra.mxu0 %v919
    %1182 = vmatprep.subr.bf16.mxu0 %v922
    %1183 = vmatpush1.bf16.msra.mxu0 %v921
    %1184 = vmatprep.subr.bf16.mxu0 %v924
    %1185 = vmatpush1.bf16.msra.mxu0 %v923
    %1186 = vmatprep.subr.bf16.mxu0 %v926
    %1187 = vmatpush1.bf16.msra.mxu0 %v925
    %1188 = vmatprep.subr.bf16.mxu0 %v928
    %1189 = vmatpush1.bf16.msra.mxu0 %v927
    %1190 = vmatprep.subr.bf16.mxu0 %v930
    %1191 = vmatpush1.bf16.msra.mxu0 %v929
    %1192 = vmatprep.subr.bf16.mxu0 %v932
    %1193 = vmatpush1.bf16.msra.mxu0 %v931
    %1194 = vmatprep.subr.bf16.mxu0 %v934
    %1195 = vmatpush1.bf16.msra.mxu0 %v933
    %1196 = vmatprep.subr.bf16.mxu0 %v936
    %1197 = vmatpush1.bf16.msra.mxu0 %v935
    %1198 = vmatprep.subr.bf16.mxu0 %v938
    %1199 = vmatpush1.bf16.msra.mxu0 %v937
    %1200 = vmatprep.subr.bf16.mxu0 %v940
    %1201 = vmatpush1.bf16.msra.mxu0 %v939
    %1202 = vmatprep.subr.bf16.mxu0 %v942
    %1203 = vmatpush1.bf16.msra.mxu0 %v941
    %1204 = vmatprep.subr.bf16.mxu0 %v944
    %1205 = vmatpush1.bf16.msra.mxu0 %v943
    %1206 = vmatprep.subr.bf16.mxu0 %v946
    %1207 = vmatpush1.bf16.msra.mxu0 %v945
    %1208 = vmatprep.mubr.bf16.mxu0 %v356
    %1209 = vmatmul.mubr.bf16.gmra.mrb[0].mxu0 %v355
    %v1210 = vpop.f32.mrb[0].mxu0
    %v1211 = vadd.f32 %v1170, %v1210
    %v1212 = vpop.f32.mrb[0].mxu0
    %v1213 = vadd.f32 %v1172, %v1212
    %v1214 = vpop.f32.mrb[0].mxu0
    %v1215 = vpop.f32.mrb[0].mxu0
    %1216 = vdwg.mxu0
    %1217 = vmatprep.subr.bf16.mxu0 %v948
    %1218 = vmatpush1.bf16.msra.mxu0 %v947
    %1219 = vmatprep.subr.bf16.mxu0 %v950
    %1220 = vmatpush1.bf16.msra.mxu0 %v949
    %1221 = vmatprep.subr.bf16.mxu0 %v952
    %1222 = vmatpush1.bf16.msra.mxu0 %v951
    %1223 = vmatprep.subr.bf16.mxu0 %v954
    %1224 = vmatpush1.bf16.msra.mxu0 %v953
    %1225 = vmatprep.subr.bf16.mxu0 %v956
    %1226 = vmatpush1.bf16.msra.mxu0 %v955
    %1227 = vmatprep.subr.bf16.mxu0 %v958
    %1228 = vmatpush1.bf16.msra.mxu0 %v957
    %1229 = vmatprep.subr.bf16.mxu0 %v960
    %1230 = vmatpush1.bf16.msra.mxu0 %v959
    %1231 = vmatprep.subr.bf16.mxu0 %v962
    %1232 = vmatpush1.bf16.msra.mxu0 %v961
    %1233 = vmatprep.subr.bf16.mxu0 %v964
    %1234 = vmatpush1.bf16.msra.mxu0 %v963
    %1235 = vmatprep.subr.bf16.mxu0 %v966
    %1236 = vmatpush1.bf16.msra.mxu0 %v965
    %1237 = vmatprep.subr.bf16.mxu0 %v968
    %1238 = vmatpush1.bf16.msra.mxu0 %v967
    %1239 = vmatprep.subr.bf16.mxu0 %v970
    %1240 = vmatpush1.bf16.msra.mxu0 %v969
    %1241 = vmatprep.subr.bf16.mxu0 0
    %1242 = vmatpush1.bf16.msra.mxu0 0
    %1243 = vmatprep.subr.bf16.mxu0 0
    %1244 = vmatpush1.bf16.msra.mxu0 0
    %1245 = vmatprep.subr.bf16.mxu0 0
    %1246 = vmatpush1.bf16.msra.mxu0 0
    %1247 = vmatprep.subr.bf16.mxu0 0
    %1248 = vmatpush1.bf16.msra.mxu0 0
    %1249 = vmatprep.mubr.bf16.mxu0 %v1092
    %1250 = vmatmul.mubr.bf16.gmra.mrb[0].mxu0 %v357
    %v1251 = vpop.f32.mrb[0].mxu0
    %v1252 = vadd.f32 %v1211, %v1251
    %v1253 = vpop.f32.mrb[0].mxu0
    %v1254 = vadd.f32 %v1213, %v1253
    %v1255 = vpop.f32.mrb[0].mxu0
    %v1256 = vpop.f32.mrb[0].mxu0
    %1257 = vdwg.mxu0
    %v1258 = vmax.f32 %v1252, 0.0
    %v1259 = vmax.f32 %v1254, 0.0
    %v1260 = vpack.c.bf16 %v1258, %v1258
    %v1261 = vpack.c.bf16 %v1259, %v1259
    %v1262 = vld [vmem:[%s8] sm:$0xf]
    %v1263 = vld [vmem:[%s8 + $0x4] sm:$0xf]
    %v1264 = vld [vmem:[%s8 + $0x8] sm:$0xf]
    %v1265 = vld [vmem:[%s8 + $0xc] sm:$0xf]
    %v1266 = vld [vmem:[%s8 + $0x10] sm:$0xf]
    %v1267 = vld [vmem:[%s8 + $0x14] sm:$0xf]
    %v1268 = vld [vmem:[%s8 + $0x18] sm:$0xf]
    %v1269 = vld [vmem:[%s8 + $0x1c] sm:$0xf]
    %v1270 = vld [vmem:[%s8 + $0x20] sm:$0xf]
    %v1271 = vld [vmem:[%s8 + $0x24] sm:$0xf]
    %v1272 = vld [vmem:[%s8 + $0x28] sm:$0xf]
    %v1273 = vld [vmem:[%s8 + $0x2c] sm:$0xf]
    %v1274 = vld [vmem:[%s8 + $0x30] sm:$0xf]
    %v1275 = vld [vmem:[%s8 + $0x34] sm:$0xf]
    %v1276 = vld [vmem:[%s8 + $0x38] sm:$0xf]
    %v1277 = vld [vmem:[%s8 + $0x3c] sm:$0xf]
    %v1278 = vld [vmem:[%s8 + $0x40] sm:$0xf]
    %v1279 = vld [vmem:[%s8 + $0x44] sm:$0xf]
    %v1280 = vld [vmem:[%s8 + $0x48] sm:$0xf]
    %v1281 = vld [vmem:[%s8 + $0x4c] sm:$0xf]
    %v1282 = vld [vmem:[%s8 + $0x50] sm:$0xf]
    %v1283 = vld [vmem:[%s8 + $0x54] sm:$0xf]
    %v1284 = vld [vmem:[%s8 + $0x58] sm:$0xf]
    %v1285 = vld [vmem:[%s8 + $0x5c] sm:$0xf]
    %v1286 = vld [vmem:[%s8 + $0x60] sm:$0xf]
    %v1287 = vld [vmem:[%s8 + $0x64] sm:$0xf]
    %v1288 = vld [vmem:[%s8 + $0x68] sm:$0xf]
    %v1289 = vld [vmem:[%s8 + $0x6c] sm:$0xf]
    %v1290 = vld [vmem:[%s8 + $0x70] sm:$0xf]
    %v1291 = vld [vmem:[%s8 + $0x74] sm:$0xf]
    %v1292 = vld [vmem:[%s8 + $0x78] sm:$0xf]
    %v1293 = vld [vmem:[%s8 + $0x7c] sm:$0xf]
    %v1294 = vld [vmem:[#allocation10] sm:$0x1]
    %v1296 = vlaneseq
    %v1297 = vshrl.u32 %v1296, 7
    %v1298 = vsub.s32 0, %v1297
    %v1299 = vrot.slane %v1294, %v1298
    %v1333 = vunpack.c.l.b16 %v1262
    %v1334 = vunpack.c.l.b16 %v1263
    %v1335 = vunpack.c.l.b16 %v1264
    %v1336 = vunpack.c.l.b16 %v1265
    %v1337 = vunpack.c.l.b16 %v1266
    %v1338 = vunpack.c.l.b16 %v1267
    %v1339 = vunpack.c.l.b16 %v1268
    %v1340 = vunpack.c.l.b16 %v1269
    %v1341 = vunpack.c.l.b16 %v1270
    %v1342 = vunpack.c.l.b16 %v1271
    %v1343 = vunpack.c.l.b16 %v1272
    %v1344 = vunpack.c.l.b16 %v1273
    %v1345 = vunpack.c.l.b16 %v1274
    %v1346 = vunpack.c.l.b16 %v1275
    %v1347 = vunpack.c.l.b16 %v1276
    %v1348 = vunpack.c.l.b16 %v1277
    %v1349 = vunpack.c.l.b16 %v1278
    %v1350 = vunpack.c.l.b16 %v1279
    %v1351 = vunpack.c.l.b16 %v1280
    %v1352 = vunpack.c.l.b16 %v1281
    %v1353 = vunpack.c.l.b16 %v1282
    %v1354 = vunpack.c.l.b16 %v1283
    %v1355 = vunpack.c.l.b16 %v1284
    %v1356 = vunpack.c.l.b16 %v1285
    %v1357 = vunpack.c.l.b16 %v1286
    %v1358 = vunpack.c.l.b16 %v1287
    %v1359 = vunpack.c.l.b16 %v1288
    %v1360 = vunpack.c.l.b16 %v1289
    %v1361 = vunpack.c.l.b16 %v1290
    %v1362 = vunpack.c.l.b16 %v1291
    %v1363 = vunpack.c.l.b16 %v1292
    %v1364 = vunpack.c.l.b16 %v1293
    %v1365 = vpack.c.b16 %v1334, %v1333
    %v1366 = vpack.c.b16 %v1336, %v1335
    %v1367 = vpack.c.b16 %v1338, %v1337
    %v1368 = vpack.c.b16 %v1340, %v1339
    %v1369 = vpack.c.b16 %v1342, %v1341
    %v1370 = vpack.c.b16 %v1344, %v1343
    %v1371 = vpack.c.b16 %v1346, %v1345
    %v1372 = vpack.c.b16 %v1348, %v1347
    %v1373 = vpack.c.b16 %v1350, %v1349
    %v1374 = vpack.c.b16 %v1352, %v1351
    %v1375 = vpack.c.b16 %v1354, %v1353
    %v1376 = vpack.c.b16 %v1356, %v1355
    %v1377 = vpack.c.b16 %v1358, %v1357
    %v1378 = vpack.c.b16 %v1360, %v1359
    %v1379 = vpack.c.b16 %v1362, %v1361
    %v1380 = vpack.c.b16 %v1364, %v1363
    %1397 = vmatprep.subr.bf16.mxu0 0
    %1398 = vmatpush1.bf16.msra.mxu0 %v1365
    %1399 = vmatprep.subr.bf16.mxu0 0
    %1400 = vmatpush1.bf16.msra.mxu0 %v1366
    %1401 = vmatprep.subr.bf16.mxu0 0
    %1402 = vmatpush1.bf16.msra.mxu0 %v1367
    %1403 = vmatprep.subr.bf16.mxu0 0
    %1404 = vmatpush1.bf16.msra.mxu0 %v1368
    %1405 = vmatprep.subr.bf16.mxu0 0
    %1406 = vmatpush1.bf16.msra.mxu0 %v1369
    %1407 = vmatprep.subr.bf16.mxu0 0
    %1408 = vmatpush1.bf16.msra.mxu0 %v1370
    %1409 = vmatprep.subr.bf16.mxu0 0
    %1410 = vmatpush1.bf16.msra.mxu0 %v1371
    %1411 = vmatprep.subr.bf16.mxu0 0
    %1412 = vmatpush1.bf16.msra.mxu0 %v1372
    %1413 = vmatprep.subr.bf16.mxu0 0
    %1414 = vmatpush1.bf16.msra.mxu0 %v1373
    %1415 = vmatprep.subr.bf16.mxu0 0
    %1416 = vmatpush1.bf16.msra.mxu0 %v1374
    %1417 = vmatprep.subr.bf16.mxu0 0
    %1418 = vmatpush1.bf16.msra.mxu0 %v1375
    %1419 = vmatprep.subr.bf16.mxu0 0
    %1420 = vmatpush1.bf16.msra.mxu0 %v1376
    %1421 = vmatprep.subr.bf16.mxu0 0
    %1422 = vmatpush1.bf16.msra.mxu0 %v1377
    %1423 = vmatprep.subr.bf16.mxu0 0
    %1424 = vmatpush1.bf16.msra.mxu0 %v1378
    %1425 = vmatprep.subr.bf16.mxu0 0
    %1426 = vmatpush1.bf16.msra.mxu0 %v1379
    %1427 = vmatprep.subr.bf16.mxu0 0
    %1428 = vmatpush1.bf16.msra.mxu0 %v1380
    %1429 = vmatprep.mubr.bf16.mxu0 %v1261
    %1430 = vmatmul.mubr.bf16.gmra.mrb[0].mxu0 %v1260
    %v1431 = vpop.f32.mrb[0].mxu0
    %v1432 = vadd.f32 %v1299, %v1431
    %v1433 = vpop.f32.mrb[0].mxu0
    %v1434 = vpop.f32.mrb[0].mxu0
    %v1435 = vpop.f32.mrb[0].mxu0
    %1436 = vdwg.mxu0
    %v1437 = vmax.f32 %v1432, 0.0
    %v1438 = vpack.c.bf16 %v1437, %v1437
    %v1439 = vld [vmem:[%s10] sm:$0xf]
    %v1440 = vld [vmem:[%s10 + $0x4] sm:$0xf]
    %v1441 = vld [vmem:[%s10 + $0x8] sm:$0xf]
    %v1442 = vld [vmem:[%s10 + $0xc] sm:$0xf]
    %v1443 = vld [vmem:[%s10 + $0x10] sm:$0xf]
    %v1444 = vld [vmem:[%s10 + $0x14] sm:$0xf]
    %v1445 = vld [vmem:[%s10 + $0x18] sm:$0xf]
    %v1446 = vld [vmem:[%s10 + $0x1c] sm:$0xf]
    %v1447 = vld [vmem:[%s10 + $0x20] sm:$0xf]
    %v1448 = vld [vmem:[%s10 + $0x24] sm:$0xf]
    %v1449 = vld [vmem:[%s10 + $0x28] sm:$0xf]
    %v1450 = vld [vmem:[%s10 + $0x2c] sm:$0xf]
    %v1451 = vld [vmem:[%s10 + $0x30] sm:$0xf]
    %v1452 = vld [vmem:[%s10 + $0x34] sm:$0xf]
    %v1453 = vld [vmem:[%s10 + $0x38] sm:$0xf]
    %v1454 = vld [vmem:[%s10 + $0x3c] sm:$0xf]
    %v1455 = vld [vmem:[%s11] sm:$0x1]
    %v1457 = vlaneseq
    %v1458 = vshrl.u32 %v1457, 7
    %v1459 = vsub.s32 0, %v1458
    %v1460 = vrot.slane %v1455, %v1459
    %v1478 = vunpack.c.l.b16 %v1439
    %v1479 = vunpack.c.l.b16 %v1440
    %v1480 = vunpack.c.l.b16 %v1441
    %v1481 = vunpack.c.l.b16 %v1442
    %v1482 = vunpack.c.l.b16 %v1443
    %v1483 = vunpack.c.l.b16 %v1444
    %v1484 = vunpack.c.l.b16 %v1445
    %v1485 = vunpack.c.l.b16 %v1446
    %v1486 = vunpack.c.l.b16 %v1447
    %v1487 = vunpack.c.l.b16 %v1448
    %v1488 = vunpack.c.l.b16 %v1449
    %v1489 = vunpack.c.l.b16 %v1450
    %v1490 = vunpack.c.l.b16 %v1451
    %v1491 = vunpack.c.l.b16 %v1452
    %v1492 = vunpack.c.l.b16 %v1453
    %v1493 = vunpack.c.l.b16 %v1454
    %v1494 = vpack.c.b16 %v1479, %v1478
    %v1495 = vpack.c.b16 %v1481, %v1480
    %v1496 = vpack.c.b16 %v1483, %v1482
    %v1497 = vpack.c.b16 %v1485, %v1484
    %v1498 = vpack.c.b16 %v1487, %v1486
    %v1499 = vpack.c.b16 %v1489, %v1488
    %v1500 = vpack.c.b16 %v1491, %v1490
    %v1501 = vpack.c.b16 %v1493, %v1492
    %1510 = vmatprep.subr.bf16.mxu0 0
    %1511 = vmatpush1.bf16.msra.mxu0 %v1494
    %1512 = vmatprep.subr.bf16.mxu0 0
    %1513 = vmatpush1.bf16.msra.mxu0 %v1495
    %1514 = vmatprep.subr.bf16.mxu0 0
    %1515 = vmatpush1.bf16.msra.mxu0 %v1496
    %1516 = vmatprep.subr.bf16.mxu0 0
    %1517 = vmatpush1.bf16.msra.mxu0 %v1497
    %1518 = vmatprep.subr.bf16.mxu0 0
    %1519 = vmatpush1.bf16.msra.mxu0 %v1498
    %1520 = vmatprep.subr.bf16.mxu0 0
    %1521 = vmatpush1.bf16.msra.mxu0 %v1499
    %1522 = vmatprep.subr.bf16.mxu0 0
    %1523 = vmatpush1.bf16.msra.mxu0 %v1500
    %1524 = vmatprep.subr.bf16.mxu0 0
    %1525 = vmatpush1.bf16.msra.mxu0 %v1501
    %1526 = vmatprep.subr.bf16.mxu0 0
    %1527 = vmatpush1.bf16.msra.mxu0 0
    %1528 = vmatprep.subr.bf16.mxu0 0
    %1529 = vmatpush1.bf16.msra.mxu0 0
    %1530 = vmatprep.subr.bf16.mxu0 0
    %1531 = vmatpush1.bf16.msra.mxu0 0
    %1532 = vmatprep.subr.bf16.mxu0 0
    %1533 = vmatpush1.bf16.msra.mxu0 0
    %1534 = vmatprep.subr.bf16.mxu0 0
    %1535 = vmatpush1.bf16.msra.mxu0 0
    %1536 = vmatprep.subr.bf16.mxu0 0
    %1537 = vmatpush1.bf16.msra.mxu0 0
    %1538 = vmatprep.subr.bf16.mxu0 0
    %1539 = vmatpush1.bf16.msra.mxu0 0
    %1540 = vmatprep.subr.bf16.mxu0 0
    %1541 = vmatpush1.bf16.msra.mxu0 0
    %1542 = vmatprep.mubr.bf16.mxu0 0
    %1543 = vmatmul.mubr.bf16.gmra.mrb[0].mxu0 %v1438
    %v1544 = vpop.f32.mrb[0].mxu0
    %v1545 = vadd.f32 %v1460, %v1544
    %v1546 = vpop.f32.mrb[0].mxu0
    %v1547 = vpop.f32.mrb[0].mxu0
    %v1548 = vpop.f32.mrb[0].mxu0
    %1549 = vdwg.mxu0
    %v1550 = vmax.f32 %v1545, 0.0
    %1552 = vrot.lane.b32.xlu0 %v1550, 64
    %v1553 = vpop.permute.xlu0 %1552
    %v1555 = vsel %vm210, %v254, %v1553
    %v1556 = vpack.c.bf16 %v1555, %v1555
    %v1557 = vld [vmem:[%s12] sm:$0xf]
    %v1558 = vld [vmem:[%s12 + $0x4] sm:$0xf]
    %v1559 = vld [vmem:[%s12 + $0x8] sm:$0xf]
    %v1560 = vld [vmem:[%s12 + $0xc] sm:$0xf]
    %v1561 = vld [vmem:[%s12 + $0x10] sm:$0xf]
    %v1562 = vld [vmem:[%s12 + $0x14] sm:$0xf]
    %v1563 = vld [vmem:[%s12 + $0x18] sm:$0xf]
    %v1564 = vld [vmem:[%s12 + $0x1c] sm:$0xf]
    %v1565 = vld [vmem:[%s12 + $0x20] sm:$0xf]
    %v1566 = vld [vmem:[%s12 + $0x24] sm:$0xf]
    %v1567 = vld [vmem:[%s12 + $0x28] sm:$0xf]
    %v1568 = vld [vmem:[%s12 + $0x2c] sm:$0xf]
    %v1569 = vld [vmem:[%s12 + $0x30] sm:$0xf]
    %v1570 = vld [vmem:[%s12 + $0x34] sm:$0xf]
    %v1571 = vld [vmem:[%s12 + $0x38] sm:$0xf]
    %v1572 = vld [vmem:[%s12 + $0x3c] sm:$0xf]
    %v1573 = vld [vmem:[%s13] sm:$0x1]
    %v1575 = vlaneseq
    %v1576 = vshrl.u32 %v1575, 7
    %v1577 = vsub.s32 0, %v1576
    %v1578 = vrot.slane %v1573, %v1577
    %v1596 = vunpack.c.l.b16 %v1557
    %v1597 = vunpack.c.l.b16 %v1558
    %v1598 = vunpack.c.l.b16 %v1559
    %v1599 = vunpack.c.l.b16 %v1560
    %v1600 = vunpack.c.l.b16 %v1561
    %v1601 = vunpack.c.l.b16 %v1562
    %v1602 = vunpack.c.l.b16 %v1563
    %v1603 = vunpack.c.l.b16 %v1564
    %v1604 = vunpack.c.l.b16 %v1565
    %v1605 = vunpack.c.l.b16 %v1566
    %v1606 = vunpack.c.l.b16 %v1567
    %v1607 = vunpack.c.l.b16 %v1568
    %v1608 = vunpack.c.l.b16 %v1569
    %v1609 = vunpack.c.l.b16 %v1570
    %v1610 = vunpack.c.l.b16 %v1571
    %v1611 = vunpack.c.l.b16 %v1572
    %v1612 = vpack.c.b16 %v1597, %v1596
    %v1613 = vpack.c.b16 %v1599, %v1598
    %v1614 = vpack.c.b16 %v1601, %v1600
    %v1615 = vpack.c.b16 %v1603, %v1602
    %v1616 = vpack.c.b16 %v1605, %v1604
    %v1617 = vpack.c.b16 %v1607, %v1606
    %v1618 = vpack.c.b16 %v1609, %v1608
    %v1619 = vpack.c.b16 %v1611, %v1610
    %1628 = vmatprep.subr.bf16.mxu0 0
    %1629 = vmatpush1.bf16.msra.mxu0 %v1612
    %1630 = vmatprep.subr.bf16.mxu0 0
    %1631 = vmatpush1.bf16.msra.mxu0 %v1613
    %1632 = vmatprep.subr.bf16.mxu0 0
    %1633 = vmatpush1.bf16.msra.mxu0 %v1614
    %1634 = vmatprep.subr.bf16.mxu0 0
    %1635 = vmatpush1.bf16.msra.mxu0 %v1615
    %1636 = vmatprep.subr.bf16.mxu0 0
    %1637 = vmatpush1.bf16.msra.mxu0 %v1616
    %1638 = vmatprep.subr.bf16.mxu0 0
    %1639 = vmatpush1.bf16.msra.mxu0 %v1617
    %1640 = vmatprep.subr.bf16.mxu0 0
    %1641 = vmatpush1.bf16.msra.mxu0 %v1618
    %1642 = vmatprep.subr.bf16.mxu0 0
    %1643 = vmatpush1.bf16.msra.mxu0 %v1619
    %1644 = vmatprep.subr.bf16.mxu0 0
    %1645 = vmatpush1.bf16.msra.mxu0 0
    %1646 = vmatprep.subr.bf16.mxu0 0
    %1647 = vmatpush1.bf16.msra.mxu0 0
    %1648 = vmatprep.subr.bf16.mxu0 0
    %1649 = vmatpush1.bf16.msra.mxu0 0
    %1650 = vmatprep.subr.bf16.mxu0 0
    %1651 = vmatpush1.bf16.msra.mxu0 0
    %1652 = vmatprep.subr.bf16.mxu0 0
    %1653 = vmatpush1.bf16.msra.mxu0 0
    %1654 = vmatprep.subr.bf16.mxu0 0
    %1655 = vmatpush1.bf16.msra.mxu0 0
    %1656 = vmatprep.subr.bf16.mxu0 0
    %1657 = vmatpush1.bf16.msra.mxu0 0
    %1658 = vmatprep.subr.bf16.mxu0 0
    %1659 = vmatpush1.bf16.msra.mxu0 0
    %1660 = vmatprep.mubr.bf16.mxu0 0
    %1661 = vmatmul.mubr.bf16.gmra.mrb[0].mxu0 %v1556
    %v1662 = vpop.f32.mrb[0].mxu0
    %v1663 = vadd.f32 %v1578, %v1662
    %v1664 = vpop.f32.mrb[0].mxu0
    %v1665 = vpop.f32.mrb[0].mxu0
    %v1666 = vpop.f32.mrb[0].mxu0
    %1667 = vdwg.mxu0
    %vm1668 = vcmask 31744
    %v1669 = vsel %vm1668, %v1663, -inf
    %1670 = vmax.xlane.f32.xlu0 %v1669
    %v1671 = vpop.xlane.xlu0 %1670
    %v1672 = vsub.f32 %v1663, %v1671
    %v1673 = vmul.f32 %v1672, 1.442695
    %v1674 = vpow.pop %v1673
    %v1675 = vsel %vm1668, %v1674, 0.0
    %1676 = vadd.xlane.f32.xlu0 %v1675
    %v1677 = vpop.xlane.xlu0 %1676
    %v1678 = vrcp.pop %v1677
    %v1679 = vmul.f32 %v1674, %v1678
    %1680 = vst.msk [vmem:[#allocation11] sm:$0xff] %vm1668, %v1679
    // Predicated region
    $region78: #{tpu_custom_call.1} parent=1 // pred_check
      _
    $region79: #{tpu_custom_call.1} parent=1 // pred_check_branch
      %1682 = sbr.rel (0) target = $region81
    $region80: #{tpu_custom_call.1} parent=1 // pred_region
      %s1684 = ssub.s32 128, 32
      %1685 = vsyncadd [#allocation4], %s1684
      %s1686 = sshll.u32 [#allocation11], 4
      %s1687 = int_to_ptr.vmem [resolvable:$true] %s1686
      %1692 = dma.vmem_to_hbm [thread:$0]  %s1687, 32, %s14, [#allocation4], 32, 32, 2
    $region81: #{tpu_custom_call.1} parent=1 // pred_fallthru
      _
    // Predicated region
    $region82: #{tpu_custom_call.1} parent=1 // pred_check
      _
    $region83: #{tpu_custom_call.1} parent=1 // pred_check_branch
      %1694 = sbr.rel (0) target = $region85
    $region84: #{tpu_custom_call.1} parent=1 // pred_region
      %1695 = dma.done [#allocation4], 128
    $region85: #{tpu_custom_call.1} parent=1 // pred_fallthru
      _
    %1696 = vsyncpa [#allocation3], 1
    %1697 = vsyncpa [#allocation6], 1
    %1698 = vsyncpa [#allocation9], 1
    %1699 = vsyncpa [#allocation4], 1

</llo_original>
